<compile_context>
chip_gen: v6e
topology: v6e:2x2x1
jax: 0.10.0
libtpu: 0.0.40
codegen_flags: <defaults>
</compile_context>

<pallas_src>
import functools

import jax
import jax.numpy as jnp
from jax.experimental import pallas as pl
from jax.experimental.pallas import tpu as pltpu


# ----------------------------------------------------------------------------
# Kernels
# ----------------------------------------------------------------------------


def _gn_rows_kernel(x_ref, oh_ref, oht_ref, gamma_ref, beta_ref, o_ref, *,
                    eps, inv_count):
    """Single-pass path: a block of TN full rows (TN, C, HW) per grid step."""
    x = x_ref[...].astype(jnp.float32)                       # (TN, C, HW)

    # Fused statistics sweep: per-channel lane reductions.
    s = jnp.sum(x, axis=-1)                                  # (TN, C)
    sq = jnp.sum(x * x, axis=-1)                             # (TN, C)

    # Group combine on the MXU (exact: one-hot weights are 0/1, f32 acc).
    gs = jnp.dot(s, oh_ref[...], preferred_element_type=jnp.float32)    # (TN, G)
    gsq = jnp.dot(sq, oh_ref[...], preferred_element_type=jnp.float32)  # (TN, G)

    mean_g = gs * inv_count
    var_g = jnp.maximum(gsq * inv_count - mean_g * mean_g, 0.0)  # biased var >= 0
    inv_g = jax.lax.rsqrt(var_g + eps)                           # EUP rsqrt

    # Scatter group stats back to channels (MXU again).
    mean_c = jnp.dot(mean_g, oht_ref[...], preferred_element_type=jnp.float32)
    inv_c = jnp.dot(inv_g, oht_ref[...], preferred_element_type=jnp.float32)

    # Fold normalization + per-channel affine into one fused multiply-add.
    scale = inv_c * gamma_ref[...]                           # (TN, C)
    shift = beta_ref[...] - mean_c * scale                   # (TN, C)
    y = x * scale[:, :, None] + shift[:, :, None]            # (TN, C, HW)
    o_ref[...] = y.astype(o_ref.dtype)


def _gn_hw_tiled_kernel(x_ref, oh_ref, oht_ref, gamma_ref, beta_ref, o_ref,
                        s_acc, sq_acc, scale_sc, shift_sc, *, eps, inv_count):
    """Two-pass fallback for rows too large for VMEM.

    Grid = (row, phase, hw_tile); phase 0 accumulates per-channel sum / sum-sq
    into VMEM scratch, phase 1 computes per-channel scale/shift once and
    normalizes every HW tile.  The output block index stays constant during
    phase 0, so nothing is flushed until real data is written in phase 1.
    """
    phase = pl.program_id(1)
    t = pl.program_id(2)

    @pl.when((phase == 0) & (t == 0))
    def _():
        s_acc[...] = jnp.zeros_like(s_acc)
        sq_acc[...] = jnp.zeros_like(sq_acc)

    @pl.when(phase == 0)
    def _():
        x = x_ref[...].astype(jnp.float32)                   # (TN, C, HWT)
        s_acc[...] += jnp.sum(x, axis=-1)
        sq_acc[...] += jnp.sum(x * x, axis=-1)

    @pl.when((phase == 1) & (t == 0))
    def _():
        gs = jnp.dot(s_acc[...], oh_ref[...], preferred_element_type=jnp.float32)
        gsq = jnp.dot(sq_acc[...], oh_ref[...], preferred_element_type=jnp.float32)
        mean_g = gs * inv_count
        var_g = jnp.maximum(gsq * inv_count - mean_g * mean_g, 0.0)
        inv_g = jax.lax.rsqrt(var_g + eps)
        mean_c = jnp.dot(mean_g, oht_ref[...], preferred_element_type=jnp.float32)
        inv_c = jnp.dot(inv_g, oht_ref[...], preferred_element_type=jnp.float32)
        scale = inv_c * gamma_ref[...]
        scale_sc[...] = scale
        shift_sc[...] = beta_ref[...] - mean_c * scale

    @pl.when(phase == 1)
    def _():
        x = x_ref[...].astype(jnp.float32)
        y = x * scale_sc[...][:, :, None] + shift_sc[...][:, :, None]
        o_ref[...] = y.astype(o_ref.dtype)


# ----------------------------------------------------------------------------
# Wrapper
# ----------------------------------------------------------------------------


def _tpu_budgets():
    """(block_bytes_target, vmem_cap_bytes) per TPU generation."""
    vmem = None
    try:
        vmem = getattr(pltpu.get_tpu_info(), "vmem_capacity_bytes", None)
    except Exception:
        vmem = None
    if vmem is not None and vmem >= (100 << 20):
        # v5e / v6e: 128 MiB physical VMEM -> big blocks, generous scoped limit.
        return (4 << 20), (96 << 20)
    # v7x (64 MiB physical) or unknown: conservative.
    return (2 << 20), (48 << 20)


def group_norm_xunet(x, gamma, beta, *, num_groups=32, eps=1e-5,
                     block_bytes_target=None, vmem_cap_bytes=None):
    """Forward pass of XUNet.GroupNorm on an NCDHW tensor."""
    B, C, D, H, W = x.shape
    G = num_groups
    assert C % G == 0, "num_channels must be divisible by num_groups"
    Cg = C // G
    N = B * D
    HW = H * W

    # Row-major reshape == the PyTorch reshape(B*D, C, 1, H, W).squeeze() trick
    # on a contiguous tensor (pure flat reinterpretation).
    x2 = x.reshape(N, C, HW)
    itemsize = x.dtype.itemsize
    row_bytes = C * HW * itemsize
    f32_row = C * HW * 4

    gen_tgt, gen_cap = _tpu_budgets()
    sel_tgt = gen_tgt if block_bytes_target is None else int(block_bytes_target)
    sel_cap = gen_cap if vmem_cap_bytes is None else int(vmem_cap_bytes)

    # Tiny resident constants: per-channel affine in f32, and the
    # channel<->group one-hot matrices used for the MXU combine/scatter.
    gamma_f = gamma.astype(jnp.float32).reshape(1, C)
    beta_f = beta.astype(jnp.float32).reshape(1, C)
    grp = jnp.arange(C, dtype=jnp.int32) // Cg
    onehot = (grp[:, None] == jnp.arange(G, dtype=jnp.int32)[None, :]
              ).astype(jnp.float32)                             # (C, G)
    onehot_t = (jnp.arange(G, dtype=jnp.int32)[:, None] == grp[None, :]
                ).astype(jnp.float32)                           # (G, C)
    params_bytes = 2 * C * G * 4 + 2 * C * 4
    headroom = 1 << 20

    def est_rows(tn):
        # 2x-in + 2x-out double buffers + ~3 f32 block temps (x, x*x, y).
        return tn * (4 * row_bytes + 3 * f32_row) + params_bytes + headroom

    kernel_args = (x2, onehot, onehot_t, gamma_f, beta_f)

    if est_rows(1) <= sel_cap:
        # ---- Single-pass row path (common case) ----
        rows_by_bytes = max(1, sel_tgt // row_bytes)
        rows_by_steps = max(1, N // 8)          # keep >= ~8 grid steps
        rows_target = int(max(1, min(rows_by_bytes, rows_by_steps, N)))
        while rows_target > 1 and est_rows(rows_target) > sel_cap:
            rows_target -= 1

        # Largest divisor of N not exceeding the target; if it is poor
        # (< half target) pad N instead of collapsing the block.
        TN = 1
        for cand in range(1, rows_target + 1):
            if N % cand == 0:
                TN = cand
        pad_rows = 0
        if 2 * TN <= rows_target:
            TN = rows_target
            pad_rows = (-N) % TN
        N_pad = N + pad_rows
        x_in = x2 if pad_rows == 0 else jnp.pad(
            x2, ((0, pad_rows), (0, 0), (0, 0)))

        vmem_limit = int(min(gen_cap, max(32 << 20, est_rows(TN))))
        kernel = functools.partial(_gn_rows_kernel, eps=float(eps),
                                   inv_count=1.0 / float(Cg * HW))
        out = pl.pallas_call(
            kernel,
            out_shape=jax.ShapeDtypeStruct((N_pad, C, HW), x.dtype),
            grid_spec=pltpu.PrefetchScalarGridSpec(
                num_scalar_prefetch=0,
                grid=(N_pad // TN,),
                in_specs=[
                    pl.BlockSpec((TN, C, HW), lambda n: (n, 0, 0)),
                    pl.BlockSpec((C, G), lambda n: (0, 0)),
                    pl.BlockSpec((G, C), lambda n: (0, 0)),
                    pl.BlockSpec((1, C), lambda n: (0, 0)),
                    pl.BlockSpec((1, C), lambda n: (0, 0)),
                ],
                out_specs=pl.BlockSpec((TN, C, HW), lambda n: (n, 0, 0)),
            ),
            compiler_params=pltpu.CompilerParams(
                dimension_semantics=("parallel",),
                vmem_limit_bytes=vmem_limit,
            ),
        )(x_in if pad_rows else x2, *kernel_args[1:])
        if pad_rows:
            out = out[:N]
    else:
        # ---- HW-tiled two-pass fallback (rows too big for VMEM, e.g. v7x) ----
        TN = 1
        scratch_bytes = 4 * TN * C * 4

        def est_hw(hwt):
            blk_in = TN * C * hwt * itemsize
            blk_f32 = TN * C * hwt * 4
            return (4 * blk_in + 3 * blk_f32 + scratch_bytes
                    + params_bytes + headroom)

        lane_quota = max(1, sel_tgt // (TN * C * itemsize))
        hwt = max(128, (lane_quota // 128) * 128)
        hwt = min(hwt, max(128, (HW // 128) * 128))
        while hwt > 128 and est_hw(hwt) > sel_cap:
            hwt -= 128
        # TODO(synk): if a single (C, 128) tile still exceeds the budget
        # (extreme C), a channel-tiled variant would be needed.
        hw_tiles = -(-HW // hwt)
        hw_pad = hw_tiles * hwt - HW
        # Zero padding keeps the statistics exact: padded lanes contribute 0
        # to sum and sum-of-squares and inv_count uses the true element count.
        x_in = x2 if hw_pad == 0 else jnp.pad(x2, ((0, 0), (0, 0), (0, hw_pad)))

        vmem_limit = int(min(gen_cap, max(32 << 20, est_hw(hwt))))
        kernel = functools.partial(_gn_hw_tiled_kernel, eps=float(eps),
                                   inv_count=1.0 / float(Cg * HW))
        out = pl.pallas_call(
            kernel,
            out_shape=jax.ShapeDtypeStruct((N, C, HW + hw_pad), x.dtype),
            grid_spec=pltpu.PrefetchScalarGridSpec(
                num_scalar_prefetch=0,
                grid=(N, 2, hw_tiles),
                in_specs=[
                    pl.BlockSpec((TN, C, hwt), lambda n, p, t: (n, 0, t)),
                    pl.BlockSpec((C, G), lambda n, p, t: (0, 0)),
                    pl.BlockSpec((G, C), lambda n, p, t: (0, 0)),
                    pl.BlockSpec((1, C), lambda n, p, t: (0, 0)),
                    pl.BlockSpec((1, C), lambda n, p, t: (0, 0)),
                ],
                # During the stats phase (p=0) the output block index stays at
                # tile 0, so no garbage is flushed; real data is written in
                # the normalize phase (p=1) tile by tile.
                out_specs=pl.BlockSpec((TN, C, hwt),
                                       lambda n, p, t: (n, 0, p * t)),
                scratch_shapes=[pltpu.VMEM((TN, C), jnp.float32)] * 4,
            ),
            compiler_params=pltpu.CompilerParams(
                dimension_semantics=("parallel", "arbitrary", "arbitrary"),
                vmem_limit_bytes=vmem_limit,
            ),
        )(x_in, *kernel_args[1:])
        if hw_pad:
            out = out[:, :, :HW]

    return out.reshape(B, C, D, H, W)


# ----------------------------------------------------------------------------
# Reference + test
# ----------------------------------------------------------------------------


def _reference(x, gamma, beta, num_groups, eps=1e-5):
    # Pure-JAX mirror of the PyTorch forward, for verification.
    B, C, D, H, W = x.shape
    N = B * D
    xr = x.reshape(N, num_groups, -1).astype(jnp.float32)
    mean = xr.mean(axis=-1, keepdims=True)
    var = ((xr - mean) ** 2).mean(axis=-1, keepdims=True)
    xn = (xr - mean) / jnp.sqrt(var + eps)
    xn = xn.reshape(N, C, H, W)
    xn = xn * gamma.reshape(1, C, 1, 1) + beta.reshape(1, C, 1, 1)
    return xn.reshape(B, C, D, H, W)


if __name__ == "__main__":
    # Small shapes consistent with the module (num_groups=32 => C % 32 == 0).
    # H*W = 256 keeps the output lane-dense; N = B*D = 32 gives an 8-step
    # grid with TN = 4 rows per block on the main path.
    B, C, D, H, W = 4, 64, 8, 16, 16
    G = 32

    key = jax.random.PRNGKey(0)
    kx, kg, kb = jax.random.split(key, 3)
    x = jax.random.normal(kx, (B, C, D, H, W), dtype=jnp.float32)
    gamma = 1.0 + 0.1 * jax.random.normal(kg, (C,), dtype=jnp.float32)
    beta = 0.1 * jax.random.normal(kb, (C,), dtype=jnp.float32)

    ref = _reference(x, gamma, beta, G)

    # 1) Main single-pass row path.
    out = jax.block_until_ready(group_norm_xunet(x, gamma, beta, num_groups=G))
    assert out.shape == (B, C, D, H, W)
    assert jnp.allclose(out, ref, atol=1e-4, rtol=1e-4), "row path mismatch"

    # 2) HW-tiled two-pass fallback, forced via tiny budgets (same answer).
    out_t = jax.block_until_ready(group_norm_xunet(
        x, gamma, beta, num_groups=G,
        block_bytes_target=32 << 10, vmem_cap_bytes=1 << 20))
    assert jnp.allclose(out_t, ref, atol=1e-4, rtol=1e-4), "tiled path mismatch"

    # 3) bf16 I/O path (HBM traffic in bf16, in-kernel stats in f32).
    xb = x.astype(jnp.bfloat16)
    out_b = jax.block_until_ready(
        group_norm_xunet(xb, gamma, beta, num_groups=G))
    ref_b = _reference(xb.astype(jnp.float32), gamma, beta, G)
    assert out_b.dtype == jnp.bfloat16
    assert jnp.allclose(out_b.astype(jnp.float32), ref_b,
                        atol=5e-2, rtol=5e-2), "bf16 path mismatch"

    print("KERNEL_OK")
</pallas_src>

<mosaic_0001>
module attributes {stable_mosaic.version = 11 : i64} {
  func.func @_gn_rows_kernel(%arg0: i32, %arg1: memref<4x64x256xf32, #tpu.memory_space<vmem>>, %arg2: memref<64x32xf32, #tpu.memory_space<vmem>>, %arg3: memref<32x64xf32, #tpu.memory_space<vmem>>, %arg4: memref<1x64xf32, #tpu.memory_space<vmem>>, %arg5: memref<1x64xf32, #tpu.memory_space<vmem>>, %arg6: memref<4x64x256xf32, #tpu.memory_space<vmem>>) attributes {dimension_semantics = [#tpu.dimension_semantics<parallel>], iteration_bounds = array<i64: 8>, scalar_prefetch = 0 : i64, scratch_operands = 0 : i64, tpu.core_type = #tpu.core_type<tc>, window_params = [{transform_indices = @transform_0, window_bounds = array<i64: 4, 64, 256>}, {pipeline_mode = #tpu.pipeline_mode<synchronous>, transform_indices = @transform_1, window_bounds = array<i64: 64, 32>}, {pipeline_mode = #tpu.pipeline_mode<synchronous>, transform_indices = @transform_2, window_bounds = array<i64: 32, 64>}, {pipeline_mode = #tpu.pipeline_mode<synchronous>, transform_indices = @transform_3, window_bounds = array<i64: 1, 64>}, {pipeline_mode = #tpu.pipeline_mode<synchronous>, transform_indices = @transform_4, window_bounds = array<i64: 1, 64>}, {transform_indices = @transform_5, window_bounds = array<i64: 4, 64, 256>}]} {
    %c0 = arith.constant 0 : index
    %c0_0 = arith.constant 0 : index
    %c0_1 = arith.constant 0 : index
    %0 = vector.load %arg1[%c0, %c0_0, %c0_1] : memref<4x64x256xf32, #tpu.memory_space<vmem>>, vector<4x64x256xf32>
    %cst = arith.constant dense<0.000000e+00> : vector<4x64xf32>
    %1 = vector.multi_reduction <add>, %0, %cst [2] : vector<4x64x256xf32> to vector<4x64xf32>
    %2 = arith.mulf %0, %0 : vector<4x64x256xf32>
    %cst_2 = arith.constant dense<0.000000e+00> : vector<4x64xf32>
    %3 = vector.multi_reduction <add>, %2, %cst_2 [2] : vector<4x64x256xf32> to vector<4x64xf32>
    %c0_3 = arith.constant 0 : index
    %c0_4 = arith.constant 0 : index
    %4 = vector.load %arg2[%c0_3, %c0_4] : memref<64x32xf32, #tpu.memory_space<vmem>>, vector<64x32xf32>
    %cst_5 = arith.constant dense<0.000000e+00> : vector<4x32xf32>
    %5 = tpu.matmul %1, %4, %cst_5 {dimension_numbers = #tpu.dot_dimension_numbers<[1], [0], [0], [1], [0, 0, 1, 1], [], []>} : vector<4x64xf32>, vector<64x32xf32>, vector<4x32xf32> -> vector<4x32xf32>
    %c0_6 = arith.constant 0 : index
    %c0_7 = arith.constant 0 : index
    %6 = vector.load %arg2[%c0_6, %c0_7] : memref<64x32xf32, #tpu.memory_space<vmem>>, vector<64x32xf32>
    %cst_8 = arith.constant dense<0.000000e+00> : vector<4x32xf32>
    %7 = tpu.matmul %3, %6, %cst_8 {dimension_numbers = #tpu.dot_dimension_numbers<[1], [0], [0], [1], [0, 0, 1, 1], [], []>} : vector<4x64xf32>, vector<64x32xf32>, vector<4x32xf32> -> vector<4x32xf32>
    %cst_9 = arith.constant 0.001953125 : f32
    %8 = vector.broadcast %cst_9 : f32 to vector<4x32xf32>
    %9 = arith.mulf %5, %8 : vector<4x32xf32>
    %cst_10 = arith.constant 0.001953125 : f32
    %10 = vector.broadcast %cst_10 : f32 to vector<4x32xf32>
    %11 = arith.mulf %7, %10 : vector<4x32xf32>
    %12 = arith.mulf %9, %9 : vector<4x32xf32>
    %13 = arith.subf %11, %12 : vector<4x32xf32>
    %cst_11 = arith.constant 0.000000e+00 : f32
    %14 = vector.broadcast %cst_11 : f32 to vector<4x32xf32>
    %15 = arith.maximumf %13, %14 : vector<4x32xf32>
    %cst_12 = arith.constant 9.99999974E-6 : f32
    %16 = vector.broadcast %cst_12 : f32 to vector<4x32xf32>
    %17 = arith.addf %15, %16 : vector<4x32xf32>
    %18 = math.rsqrt %17 : vector<4x32xf32>
    %c0_13 = arith.constant 0 : index
    %c0_14 = arith.constant 0 : index
    %19 = vector.load %arg3[%c0_13, %c0_14] : memref<32x64xf32, #tpu.memory_space<vmem>>, vector<32x64xf32>
    %cst_15 = arith.constant dense<0.000000e+00> : vector<4x64xf32>
    %20 = tpu.matmul %9, %19, %cst_15 {dimension_numbers = #tpu.dot_dimension_numbers<[1], [0], [0], [1], [0, 0, 1, 1], [], []>} : vector<4x32xf32>, vector<32x64xf32>, vector<4x64xf32> -> vector<4x64xf32>
    %c0_16 = arith.constant 0 : index
    %c0_17 = arith.constant 0 : index
    %21 = vector.load %arg3[%c0_16, %c0_17] : memref<32x64xf32, #tpu.memory_space<vmem>>, vector<32x64xf32>
    %cst_18 = arith.constant dense<0.000000e+00> : vector<4x64xf32>
    %22 = tpu.matmul %18, %21, %cst_18 {dimension_numbers = #tpu.dot_dimension_numbers<[1], [0], [0], [1], [0, 0, 1, 1], [], []>} : vector<4x32xf32>, vector<32x64xf32>, vector<4x64xf32> -> vector<4x64xf32>
    %c0_19 = arith.constant 0 : index
    %c0_20 = arith.constant 0 : index
    %23 = vector.load %arg4[%c0_19, %c0_20] : memref<1x64xf32, #tpu.memory_space<vmem>>, vector<1x64xf32>
    %24 = vector.broadcast %23 : vector<1x64xf32> to vector<4x64xf32>
    %25 = arith.mulf %22, %24 : vector<4x64xf32>
    %c0_21 = arith.constant 0 : index
    %c0_22 = arith.constant 0 : index
    %26 = vector.load %arg5[%c0_21, %c0_22] : memref<1x64xf32, #tpu.memory_space<vmem>>, vector<1x64xf32>
    %27 = arith.mulf %20, %25 : vector<4x64xf32>
    %28 = vector.broadcast %26 : vector<1x64xf32> to vector<4x64xf32>
    %29 = arith.subf %28, %27 : vector<4x64xf32>
    %30 = vector.shape_cast %25 : vector<4x64xf32> to vector<4x64x1xf32>
    %31 = vector.broadcast %30 : vector<4x64x1xf32> to vector<4x64x256xf32>
    %32 = arith.mulf %0, %31 : vector<4x64x256xf32>
    %33 = vector.shape_cast %29 : vector<4x64xf32> to vector<4x64x1xf32>
    %34 = vector.broadcast %33 : vector<4x64x1xf32> to vector<4x64x256xf32>
    %35 = arith.addf %32, %34 : vector<4x64x256xf32>
    %c0_23 = arith.constant 0 : index
    %c0_24 = arith.constant 0 : index
    %c0_25 = arith.constant 0 : index
    %36 = vector.load %arg6[%c0_23, %c0_24, %c0_25] : memref<4x64x256xf32, #tpu.memory_space<vmem>>, vector<4x64x256xf32>
    tpu.vector_store %arg6[%c0_23, %c0_24, %c0_25], %35 {strides = array<i32>} : memref<4x64x256xf32, #tpu.memory_space<vmem>>, vector<4x64x256xf32>,
    return
  }
  func.func @transform_0(%arg0: i32) -> (i32, i32, i32) {
    %c0_i32 = arith.constant 0 : i32
    %c0_i32_0 = arith.constant 0 : i32
    %c0_i32_1 = arith.constant 0 : i32
    return %arg0, %c0_i32, %c0_i32_0 : i32, i32, i32
  }
  func.func @transform_1(%arg0: i32) -> (i32, i32) {
    %c0_i32 = arith.constant 0 : i32
    %c0_i32_0 = arith.constant 0 : i32
    %c0_i32_1 = arith.constant 0 : i32
    return %c0_i32, %c0_i32_0 : i32, i32
  }
  func.func @transform_2(%arg0: i32) -> (i32, i32) {
    %c0_i32 = arith.constant 0 : i32
    %c0_i32_0 = arith.constant 0 : i32
    %c0_i32_1 = arith.constant 0 : i32
    return %c0_i32, %c0_i32_0 : i32, i32
  }
  func.func @transform_3(%arg0: i32) -> (i32, i32) {
    %c0_i32 = arith.constant 0 : i32
    %c0_i32_0 = arith.constant 0 : i32
    %c0_i32_1 = arith.constant 0 : i32
    return %c0_i32, %c0_i32_0 : i32, i32
  }
  func.func @transform_4(%arg0: i32) -> (i32, i32) {
    %c0_i32 = arith.constant 0 : i32
    %c0_i32_0 = arith.constant 0 : i32
    %c0_i32_1 = arith.constant 0 : i32
    return %c0_i32, %c0_i32_0 : i32, i32
  }
  func.func @transform_5(%arg0: i32) -> (i32, i32, i32) {
    %c0_i32 = arith.constant 0 : i32
    %c0_i32_0 = arith.constant 0 : i32
    %c0_i32_1 = arith.constant 0 : i32
    return %arg0, %c0_i32, %c0_i32_0 : i32, i32, i32
  }
}

</mosaic_0001>

<llo_original>
// kernel: tpu_custom_call.1
$region0: #{tpu_custom_call.1}
  #allocation0 [shape = 'u32[]', space=smem, size = 0x4, offset = 0x4, fixed_abs, tag = 'smem constant byte address 0x4 - core index']
  #allocation1 [shape = 'u32[144,128]{1,0:T(1,128)}', space=vmem, size = 0x12000, scoped, tag = 'internal scratch']
  %s0 = inlined_call_operand.hbm [shape: f32[32,64,256], index: 0, kind: input, shape index: {}]
  %s1 = inlined_call_operand.vmem [shape: f32[64,32], index: 1, kind: input, shape index: {}]
  %s2 = inlined_call_operand.hbm [shape: f32[32,64], index: 2, kind: input, shape index: {}]
  %s3 = inlined_call_operand.hbm [shape: f32[1,64], index: 3, kind: input, shape index: {}]
  %s4 = inlined_call_operand.hbm [shape: f32[1,64], index: 4, kind: input, shape index: {}]
  %s5 = inlined_call_operand.hbm [shape: f32[32,64,256], index: 5, kind: output, shape index: {}]
  %s6 = sld [smem:[#allocation0]]
  $region69: #{tpu_custom_call.1} parent=0
    _
  %s8 = ssub.s32 1, %s6
  %s9 = scalar_select 0, %s8, %s6
  $region1: #{tpu_custom_call.1} parent=0
    #allocation2 [shape = 'u8[524288]{0}', space=vmem, size = 0x80000, scoped, tag = 'input window, operand 0']
    #allocation3 [shape = 's32[2]{0}', space=sflag, size = 0x8, scoped, tag = 'scoped memory for tpu_custom_call.1']
    #allocation4 [shape = 's32[2]{0}', space=sflag, size = 0x8, scoped, tag = 'scoped memory for tpu_custom_call.1']
    #allocation5 [shape = 'u8[16384]{0}', space=vmem, size = 0x4000, scoped, tag = 'input window, operand 2, single buffered']
    #allocation6 [shape = 's32[1]{0}', space=sflag, size = 0x4, scoped, tag = 'scoped memory for tpu_custom_call.1']
    #allocation7 [shape = 'u8[512]{0}', space=vmem, size = 0x400, scoped, tag = 'input window, operand 3, single buffered']
    #allocation8 [shape = 'u8[512]{0}', space=vmem, size = 0x400, scoped, tag = 'input window, operand 4, single buffered']
    #allocation9 [shape = 's32[1]{0}', space=sflag, size = 0x4, scoped, tag = 'scoped memory for tpu_custom_call.1']
    #allocation10 [shape = 'u8[524288]{0}', space=vmem, size = 0x80000, scoped, tag = 'output window, operand 0']
    %10 = vsyncpa [#allocation3], 0
    %s11 = scalar_lea.sflag [#allocation3], 1
    %12 = vsyncpa %s11, 0
    %13 = vsyncpa [#allocation6], 0
    %14 = vsyncpa [#allocation9], 0
    %15 = vsyncpa [#allocation4], 0
    %s16 = scalar_lea.sflag [#allocation4], 1
    %17 = vsyncpa %s16, 0
    loop: start=0, step=1, limit=10
    $region2: #{tpu_custom_call.1} parent=1 // loop_pre_header
      _
    $region3: #{tpu_custom_call.1} parent=1 // loop_header
      %s19 = sphi 0, %s23
      %p20 = scmp.ge.s32.totalorder %s19, 10
      %s29 = sphi 0, %s31
      %s32 = sphi 0, %s29
      %s33 = sphi 0, %s32
      %s49 = sphi 0, %s33
      %s53 = sphi 0, %s53
      %s55 = sphi 0, %s53
      %s56 = sphi 0, %s55
      %s70 = sphi 0, %s56
      %s74 = sphi 0, %s74
      %s76 = sphi 0, %s74
      %s77 = sphi 0, %s76
      %s91 = sphi 0, %s77
      %s95 = sphi 0, %s95
      %s97 = sphi 0, %s95
      %s98 = sphi 0, %s97
      %s112 = sphi 0, %s98
      %s116 = sphi 0, %s116
      %s118 = sphi 0, %s116
      %s119 = sphi 0, %s118
      %s133 = sphi 0, %s119
      %s139 = sphi 0, %s141
      %s142 = sphi 0, %s139
      %s143 = sphi 0, %s142
      %s159 = sphi 0, %s143
    $region4: #{tpu_custom_call.1} parent=1 // loop_header_branch
      %22 = sbr.rel (%p20) target = $region8
    $region5: #{tpu_custom_call.1} parent=1 // loop_body
      %s24 = ssub.s32 %s19, 1
      %s25 = ssub.s32 %s19, 2
      %s26 = sadd.s32 %s19, 1
      %s27 = ssub.s32 %s19, %s26
      %p28 = scmp.eq.s32.totalorder %s27, 0
      %s30 = sadd.s32 %s29, 1
      %s31 = scalar_select %p28, %s29, %s30
      %p34 = pneg %p28
      %p35 = scmp.eq.s32.totalorder %s19, 7
      %p36 = por %p34, %p35
      %p37 = scmp.ne.s32.totalorder %s29, %s32
      %p38 = scmp.eq.s32.totalorder %s19, 0
      %p39 = por %p37, %p38
      %p40 = scmp.ne.s32.totalorder %s29, %s32
      %p41 = scmp.eq.s32.totalorder %s24, 7
      %p42 = por %p40, %p41
      %p43 = scmp.ne.s32.totalorder %s32, %s33
      %p44 = scmp.eq.s32.totalorder %s24, 0
      %p45 = por %p43, %p44
      %p46 = scmp.ne.s32.totalorder %s32, %s33
      %p47 = scmp.eq.s32.totalorder %s25, 7
      %p48 = por %p46, %p47
      %p50 = scmp.ne.s32.totalorder %s33, %s49
      %p51 = scmp.eq.s32.totalorder %s25, 0
      %p52 = por %p50, %p51
      %s54 = sadd.s32 %s53, 1
      %p57 = scmp.eq.s32.totalorder %s19, 7
      %p58 = scmp.ne.s32.totalorder %s53, %s55
      %p59 = scmp.eq.s32.totalorder %s19, 0
      %p60 = por %p58, %p59
      %p61 = scmp.ne.s32.totalorder %s53, %s55
      %p62 = scmp.eq.s32.totalorder %s24, 7
      %p63 = por %p61, %p62
      %p64 = scmp.ne.s32.totalorder %s55, %s56
      %p65 = scmp.eq.s32.totalorder %s24, 0
      %p66 = por %p64, %p65
      %p67 = scmp.ne.s32.totalorder %s55, %s56
      %p68 = scmp.eq.s32.totalorder %s25, 7
      %p69 = por %p67, %p68
      %p71 = scmp.ne.s32.totalorder %s56, %s70
      %p72 = scmp.eq.s32.totalorder %s25, 0
      %p73 = por %p71, %p72
      %s75 = sadd.s32 %s74, 1
      %p78 = scmp.eq.s32.totalorder %s19, 7
      %p79 = scmp.ne.s32.totalorder %s74, %s76
      %p80 = scmp.eq.s32.totalorder %s19, 0
      %p81 = por %p79, %p80
      %p82 = scmp.ne.s32.totalorder %s74, %s76
      %p83 = scmp.eq.s32.totalorder %s24, 7
      %p84 = por %p82, %p83
      %p85 = scmp.ne.s32.totalorder %s76, %s77
      %p86 = scmp.eq.s32.totalorder %s24, 0
      %p87 = por %p85, %p86
      %p88 = scmp.ne.s32.totalorder %s76, %s77
      %p89 = scmp.eq.s32.totalorder %s25, 7
      %p90 = por %p88, %p89
      %p92 = scmp.ne.s32.totalorder %s77, %s91
      %p93 = scmp.eq.s32.totalorder %s25, 0
      %p94 = por %p92, %p93
      %s96 = sadd.s32 %s95, 1
      %p99 = scmp.eq.s32.totalorder %s19, 7
      %p100 = scmp.ne.s32.totalorder %s95, %s97
      %p101 = scmp.eq.s32.totalorder %s19, 0
      %p102 = por %p100, %p101
      %p103 = scmp.ne.s32.totalorder %s95, %s97
      %p104 = scmp.eq.s32.totalorder %s24, 7
      %p105 = por %p103, %p104
      %p106 = scmp.ne.s32.totalorder %s97, %s98
      %p107 = scmp.eq.s32.totalorder %s24, 0
      %p108 = por %p106, %p107
      %p109 = scmp.ne.s32.totalorder %s97, %s98
      %p110 = scmp.eq.s32.totalorder %s25, 7
      %p111 = por %p109, %p110
      %p113 = scmp.ne.s32.totalorder %s98, %s112
      %p114 = scmp.eq.s32.totalorder %s25, 0
      %p115 = por %p113, %p114
      %s117 = sadd.s32 %s116, 1
      %p120 = scmp.eq.s32.totalorder %s19, 7
      %p121 = scmp.ne.s32.totalorder %s116, %s118
      %p122 = scmp.eq.s32.totalorder %s19, 0
      %p123 = por %p121, %p122
      %p124 = scmp.ne.s32.totalorder %s116, %s118
      %p125 = scmp.eq.s32.totalorder %s24, 7
      %p126 = por %p124, %p125
      %p127 = scmp.ne.s32.totalorder %s118, %s119
      %p128 = scmp.eq.s32.totalorder %s24, 0
      %p129 = por %p127, %p128
      %p130 = scmp.ne.s32.totalorder %s118, %s119
      %p131 = scmp.eq.s32.totalorder %s25, 7
      %p132 = por %p130, %p131
      %p134 = scmp.ne.s32.totalorder %s119, %s133
      %p135 = scmp.eq.s32.totalorder %s25, 0
      %p136 = por %p134, %p135
      %s137 = ssub.s32 %s19, %s26
      %p138 = scmp.eq.s32.totalorder %s137, 0
      %s140 = sadd.s32 %s139, 1
      %s141 = scalar_select %p138, %s139, %s140
      %p144 = pneg %p138
      %p145 = scmp.eq.s32.totalorder %s19, 7
      %p146 = por %p144, %p145
      %p147 = scmp.ne.s32.totalorder %s139, %s142
      %p148 = scmp.eq.s32.totalorder %s19, 0
      %p149 = por %p147, %p148
      %p150 = scmp.ne.s32.totalorder %s139, %s142
      %p151 = scmp.eq.s32.totalorder %s24, 7
      %p152 = por %p150, %p151
      %p153 = scmp.ne.s32.totalorder %s142, %s143
      %p154 = scmp.eq.s32.totalorder %s24, 0
      %p155 = por %p153, %p154
      %p156 = scmp.ne.s32.totalorder %s142, %s143
      %p157 = scmp.eq.s32.totalorder %s25, 7
      %p158 = por %p156, %p157
      %p160 = scmp.ne.s32.totalorder %s143, %s159
      %p161 = scmp.eq.s32.totalorder %s25, 0
      %p162 = por %p160, %p161
      %p163 = scmp.le.s32.totalorder 1, %s19
      %p164 = scmp.lt.s32.totalorder %s19, 9
      %p165 = pnand %p163, %p164
      %p166 = pneg %p165
      // Predicated region
      $region9: #{tpu_custom_call.1} parent=5 // pred_check
        _
      $region10: #{tpu_custom_call.1} parent=5 // pred_check_branch
        %168 = sbr.rel (%p165) target = $region12
      $region11: #{tpu_custom_call.1} parent=5 // pred_region
        %s169 = ssub.s32 %s19, 1
        // Predicated region
        $region13: #{tpu_custom_call.1} parent=11 // pred_check
          %p170 = pneg %p66
        $region14: #{tpu_custom_call.1} parent=11 // pred_check_branch
          %172 = sbr.rel (%p170) target = $region16
        $region15: #{tpu_custom_call.1} parent=11 // pred_region
          _
        $region16: #{tpu_custom_call.1} parent=11 // pred_fallthru
          _
        // Predicated region
        $region17: #{tpu_custom_call.1} parent=11 // pred_check
          %p173 = pneg %p87
        $region18: #{tpu_custom_call.1} parent=11 // pred_check_branch
          %175 = sbr.rel (%p173) target = $region20
        $region19: #{tpu_custom_call.1} parent=11 // pred_region
          %s177 = ssub.s32 512, 512
          %178 = vsyncadd [#allocation6], %s177
          %s179 = sshll.u32 [#allocation5], 4
          %s180 = int_to_ptr.vmem [resolvable:$true] %s179
          %185 = dma.hbm_to_vmem [thread:$0]  %s2, 512, %s180, [#allocation6], 128, 128, 8
        $region20: #{tpu_custom_call.1} parent=11 // pred_fallthru
          _
        // Predicated region
        $region21: #{tpu_custom_call.1} parent=11 // pred_check
          %p186 = pneg %p108
        $region22: #{tpu_custom_call.1} parent=11 // pred_check_branch
          %188 = sbr.rel (%p186) target = $region24
        $region23: #{tpu_custom_call.1} parent=11 // pred_region
          %s190 = ssub.s32 16, 16
          %191 = vsyncadd [#allocation6], %s190
          %s193 = sshll.u32 [#allocation7], 4
          %s194 = int_to_ptr.vmem [resolvable:$true] %s193
          %196 = dma.hbm_to_vmem [thread:$0]  %s3, 16, %s194, [#allocation6]
        $region24: #{tpu_custom_call.1} parent=11 // pred_fallthru
          _
        // Predicated region
        $region25: #{tpu_custom_call.1} parent=11 // pred_check
          %p197 = pneg %p129
        $region26: #{tpu_custom_call.1} parent=11 // pred_check_branch
          %199 = sbr.rel (%p197) target = $region28
        $region27: #{tpu_custom_call.1} parent=11 // pred_region
          %s201 = ssub.s32 16, 16
          %202 = vsyncadd [#allocation9], %s201
          %s204 = sshll.u32 [#allocation8], 4
          %s205 = int_to_ptr.vmem [resolvable:$true] %s204
          %207 = dma.hbm_to_vmem [thread:$0]  %s4, 16, %s205, [#allocation9]
        $region28: #{tpu_custom_call.1} parent=11 // pred_fallthru
          _
      $region12: #{tpu_custom_call.1} parent=5 // pred_fallthru
        _
      %p208 = scmp.lt.s32.totalorder %s19, 8
      // Predicated region
      $region29: #{tpu_custom_call.1} parent=5 // pred_check
        %p209 = pneg %p208
      $region30: #{tpu_custom_call.1} parent=5 // pred_check_branch
        %211 = sbr.rel (%p209) target = $region32
      $region31: #{tpu_custom_call.1} parent=5 // pred_region
        // Predicated region
        $region33: #{tpu_custom_call.1} parent=31 // pred_check
          %p212 = pneg %p39
        $region34: #{tpu_custom_call.1} parent=31 // pred_check_branch
          %214 = sbr.rel (%p212) target = $region36
        $region35: #{tpu_custom_call.1} parent=31 // pred_region
          %s215 = sand.u32 %s29, 1
          %s216 = scalar_lea.sflag [#allocation3], %s215
          %s217 = sand.u32 %s29, 1
          %s218 = smul.addr %s217, 512
          %s219 = scalar_lea.vmem [#allocation2], %s218
          %s220 = smul.u32 4, %s19
          %s222 = ssub.s32 8192, 8192
          %223 = vsyncadd %s216, %s222
          %s224 = smul.addr %s220, 16
          %s225 = smul.addr %s224, 128
          %s226 = scalar_lea.hbm %s0, %s225
          %s227 = sshll.u32 %s219, 4
          %s228 = int_to_ptr.vmem [resolvable:$true] %s227
          %233 = dma.hbm_to_vmem [thread:$0]  %s226, 8192, %s228, %s216, 256, 256, 16
        $region36: #{tpu_custom_call.1} parent=31 // pred_fallthru
          _
      $region32: #{tpu_custom_call.1} parent=5 // pred_fallthru
        _
      %p234 = scmp.le.s32.totalorder 1, %s19
      %p235 = scmp.lt.s32.totalorder %s19, 9
      %p236 = pnand %p234, %p235
      %p237 = pneg %p236
      // Predicated region
      $region37: #{tpu_custom_call.1} parent=5 // pred_check
        _
      $region38: #{tpu_custom_call.1} parent=5 // pred_check_branch
        %239 = sbr.rel (%p236) target = $region40
      $region39: #{tpu_custom_call.1} parent=5 // pred_region
        %s240 = ssub.s32 %s19, 1
        %s241 = sand.u32 %s32, 1
        %s242 = scalar_lea.sflag [#allocation3], %s241
        %s243 = sand.u32 %s32, 1
        %s244 = smul.addr %s243, 512
        %s245 = scalar_lea.vmem [#allocation2], %s244
        // Predicated region
        $region41: #{tpu_custom_call.1} parent=39 // pred_check
          %p246 = pneg %p45
        $region42: #{tpu_custom_call.1} parent=39 // pred_check_branch
          %248 = sbr.rel (%p246) target = $region44
        $region43: #{tpu_custom_call.1} parent=39 // pred_region
          %249 = dma.done %s242, 8192
        $region44: #{tpu_custom_call.1} parent=39 // pred_fallthru
          _
        // Predicated region
        $region45: #{tpu_custom_call.1} parent=39 // pred_check
          %p250 = pneg %p87
        $region46: #{tpu_custom_call.1} parent=39 // pred_check_branch
          %252 = sbr.rel (%p250) target = $region48
        $region47: #{tpu_custom_call.1} parent=39 // pred_region
          %253 = dma.done [#allocation6], 512
        $region48: #{tpu_custom_call.1} parent=39 // pred_fallthru
          _
        // Predicated region
        $region49: #{tpu_custom_call.1} parent=39 // pred_check
          %p254 = pneg %p108
        $region50: #{tpu_custom_call.1} parent=39 // pred_check_branch
          %256 = sbr.rel (%p254) target = $region52
        $region51: #{tpu_custom_call.1} parent=39 // pred_region
          %257 = dma.done [#allocation6], 16
        $region52: #{tpu_custom_call.1} parent=39 // pred_fallthru
          _
        // Predicated region
        $region53: #{tpu_custom_call.1} parent=39 // pred_check
          %p258 = pneg %p129
        $region54: #{tpu_custom_call.1} parent=39 // pred_check_branch
          %260 = sbr.rel (%p258) target = $region56
        $region55: #{tpu_custom_call.1} parent=39 // pred_region
          %261 = dma.done [#allocation9], 16
        $region56: #{tpu_custom_call.1} parent=39 // pred_fallthru
          _
        %s262 = sand.u32 %s32, 1
        %s263 = scalar_lea.sflag [#allocation3], %s262
        %s264 = sand.u32 %s32, 1
        %s265 = smul.addr %s264, 512
        %s266 = scalar_lea.vmem [#allocation2], %s265
        %p267 = pneg %p45
        %p268 = pneg %p42
        %p269 = pneg %p66
        %p270 = pneg %p63
        %p271 = pneg %p87
        %p272 = pneg %p84
        %p273 = pneg %p108
        %p274 = pneg %p105
        %p275 = pneg %p129
        %p276 = pneg %p126
        %p277 = pneg %p155
        %p278 = pneg %p152
        %s279 = sand.u32 %s142, 1
        %s280 = scalar_lea.sflag [#allocation4], %s279
        %s281 = sand.u32 %s142, 1
        %s282 = smul.addr %s281, 512
        %s283 = scalar_lea.vmem [#allocation10], %s282
        %s284 = smul.u32 4, %s24
        %s285 = smul.u32 4, %s24
        %v286 = vld [vmem:[%s245] sm:$0xff]
        %v287 = vld [vmem:[%s245 + $0x8] sm:$0xff]
        %v288 = vld [vmem:[%s245 + $0x10] sm:$0xff]
        %v289 = vld [vmem:[%s245 + $0x18] sm:$0xff]
        %v290 = vld [vmem:[%s245 + $0x20] sm:$0xff]
        %v291 = vld [vmem:[%s245 + $0x28] sm:$0xff]
        %v292 = vld [vmem:[%s245 + $0x30] sm:$0xff]
        %v293 = vld [vmem:[%s245 + $0x38] sm:$0xff]
        %v294 = vld [vmem:[%s245 + $0x40] sm:$0xff]
        %v295 = vld [vmem:[%s245 + $0x48] sm:$0xff]
        %v296 = vld [vmem:[%s245 + $0x50] sm:$0xff]
        %v297 = vld [vmem:[%s245 + $0x58] sm:$0xff]
        %v298 = vld [vmem:[%s245 + $0x60] sm:$0xff]
        %v299 = vld [vmem:[%s245 + $0x68] sm:$0xff]
        %v300 = vld [vmem:[%s245 + $0x70] sm:$0xff]
        %v301 = vld [vmem:[%s245 + $0x78] sm:$0xff]
        %v302 = vld [vmem:[%s245 + $0x80] sm:$0xff]
        %v303 = vld [vmem:[%s245 + $0x88] sm:$0xff]
        %v304 = vld [vmem:[%s245 + $0x90] sm:$0xff]
        %v305 = vld [vmem:[%s245 + $0x98] sm:$0xff]
        %v306 = vld [vmem:[%s245 + $0xa0] sm:$0xff]
        %v307 = vld [vmem:[%s245 + $0xa8] sm:$0xff]
        %v308 = vld [vmem:[%s245 + $0xb0] sm:$0xff]
        %v309 = vld [vmem:[%s245 + $0xb8] sm:$0xff]
        %v310 = vld [vmem:[%s245 + $0xc0] sm:$0xff]
        %v311 = vld [vmem:[%s245 + $0xc8] sm:$0xff]
        %v312 = vld [vmem:[%s245 + $0xd0] sm:$0xff]
        %v313 = vld [vmem:[%s245 + $0xd8] sm:$0xff]
        %v314 = vld [vmem:[%s245 + $0xe0] sm:$0xff]
        %v315 = vld [vmem:[%s245 + $0xe8] sm:$0xff]
        %v316 = vld [vmem:[%s245 + $0xf0] sm:$0xff]
        %v317 = vld [vmem:[%s245 + $0xf8] sm:$0xff]
        %v318 = vld [vmem:[%s245 + $0x100] sm:$0xff]
        %v319 = vld [vmem:[%s245 + $0x108] sm:$0xff]
        %v320 = vld [vmem:[%s245 + $0x110] sm:$0xff]
        %v321 = vld [vmem:[%s245 + $0x118] sm:$0xff]
        %v322 = vld [vmem:[%s245 + $0x120] sm:$0xff]
        %v323 = vld [vmem:[%s245 + $0x128] sm:$0xff]
        %v324 = vld [vmem:[%s245 + $0x130] sm:$0xff]
        %v325 = vld [vmem:[%s245 + $0x138] sm:$0xff]
        %v326 = vld [vmem:[%s245 + $0x140] sm:$0xff]
        %v327 = vld [vmem:[%s245 + $0x148] sm:$0xff]
        %v328 = vld [vmem:[%s245 + $0x150] sm:$0xff]
        %v329 = vld [vmem:[%s245 + $0x158] sm:$0xff]
        %v330 = vld [vmem:[%s245 + $0x160] sm:$0xff]
        %v331 = vld [vmem:[%s245 + $0x168] sm:$0xff]
        %v332 = vld [vmem:[%s245 + $0x170] sm:$0xff]
        %v333 = vld [vmem:[%s245 + $0x178] sm:$0xff]
        %v334 = vld [vmem:[%s245 + $0x180] sm:$0xff]
        %v335 = vld [vmem:[%s245 + $0x188] sm:$0xff]
        %v336 = vld [vmem:[%s245 + $0x190] sm:$0xff]
        %v337 = vld [vmem:[%s245 + $0x198] sm:$0xff]
        %v338 = vld [vmem:[%s245 + $0x1a0] sm:$0xff]
        %v339 = vld [vmem:[%s245 + $0x1a8] sm:$0xff]
        %v340 = vld [vmem:[%s245 + $0x1b0] sm:$0xff]
        %v341 = vld [vmem:[%s245 + $0x1b8] sm:$0xff]
        %v342 = vld [vmem:[%s245 + $0x1c0] sm:$0xff]
        %v343 = vld [vmem:[%s245 + $0x1c8] sm:$0xff]
        %v344 = vld [vmem:[%s245 + $0x1d0] sm:$0xff]
        %v345 = vld [vmem:[%s245 + $0x1d8] sm:$0xff]
        %v346 = vld [vmem:[%s245 + $0x1e0] sm:$0xff]
        %v347 = vld [vmem:[%s245 + $0x1e8] sm:$0xff]
        %v348 = vld [vmem:[%s245 + $0x1f0] sm:$0xff]
        %v349 = vld [vmem:[%s245 + $0x1f8] sm:$0xff]
        %v350 = vadd.f32 %v286, %v287
        %351 = vadd.xlane.f32.xlu0 %v350
        %v352 = vpop.xlane.xlu0 %351
        %v353 = vadd.f32 %v288, %v289
        %354 = vadd.xlane.f32.xlu0 %v353
        %v355 = vpop.xlane.xlu0 %354
        %v356 = vadd.f32 %v290, %v291
        %357 = vadd.xlane.f32.xlu0 %v356
        %v358 = vpop.xlane.xlu0 %357
        %v359 = vadd.f32 %v292, %v293
        %360 = vadd.xlane.f32.xlu0 %v359
        %v361 = vpop.xlane.xlu0 %360
        %v362 = vadd.f32 %v294, %v295
        %363 = vadd.xlane.f32.xlu0 %v362
        %v364 = vpop.xlane.xlu0 %363
        %v365 = vadd.f32 %v296, %v297
        %366 = vadd.xlane.f32.xlu0 %v365
        %v367 = vpop.xlane.xlu0 %366
        %v368 = vadd.f32 %v298, %v299
        %369 = vadd.xlane.f32.xlu0 %v368
        %v370 = vpop.xlane.xlu0 %369
        %v371 = vadd.f32 %v300, %v301
        %372 = vadd.xlane.f32.xlu0 %v371
        %v373 = vpop.xlane.xlu0 %372
        %v374 = vadd.f32 %v302, %v303
        %375 = vadd.xlane.f32.xlu0 %v374
        %v376 = vpop.xlane.xlu0 %375
        %v377 = vadd.f32 %v304, %v305
        %378 = vadd.xlane.f32.xlu0 %v377
        %v379 = vpop.xlane.xlu0 %378
        %v380 = vadd.f32 %v306, %v307
        %381 = vadd.xlane.f32.xlu0 %v380
        %v382 = vpop.xlane.xlu0 %381
        %v383 = vadd.f32 %v308, %v309
        %384 = vadd.xlane.f32.xlu0 %v383
        %v385 = vpop.xlane.xlu0 %384
        %v386 = vadd.f32 %v310, %v311
        %387 = vadd.xlane.f32.xlu0 %v386
        %v388 = vpop.xlane.xlu0 %387
        %v389 = vadd.f32 %v312, %v313
        %390 = vadd.xlane.f32.xlu0 %v389
        %v391 = vpop.xlane.xlu0 %390
        %v392 = vadd.f32 %v314, %v315
        %393 = vadd.xlane.f32.xlu0 %v392
        %v394 = vpop.xlane.xlu0 %393
        %v395 = vadd.f32 %v316, %v317
        %396 = vadd.xlane.f32.xlu0 %v395
        %v397 = vpop.xlane.xlu0 %396
        %v398 = vadd.f32 %v318, %v319
        %399 = vadd.xlane.f32.xlu0 %v398
        %v400 = vpop.xlane.xlu0 %399
        %v401 = vadd.f32 %v320, %v321
        %402 = vadd.xlane.f32.xlu0 %v401
        %v403 = vpop.xlane.xlu0 %402
        %v404 = vadd.f32 %v322, %v323
        %405 = vadd.xlane.f32.xlu0 %v404
        %v406 = vpop.xlane.xlu0 %405
        %v407 = vadd.f32 %v324, %v325
        %408 = vadd.xlane.f32.xlu0 %v407
        %v409 = vpop.xlane.xlu0 %408
        %v410 = vadd.f32 %v326, %v327
        %411 = vadd.xlane.f32.xlu0 %v410
        %v412 = vpop.xlane.xlu0 %411
        %v413 = vadd.f32 %v328, %v329
        %414 = vadd.xlane.f32.xlu0 %v413
        %v415 = vpop.xlane.xlu0 %414
        %v416 = vadd.f32 %v330, %v331
        %417 = vadd.xlane.f32.xlu0 %v416
        %v418 = vpop.xlane.xlu0 %417
        %v419 = vadd.f32 %v332, %v333
        %420 = vadd.xlane.f32.xlu0 %v419
        %v421 = vpop.xlane.xlu0 %420
        %v422 = vadd.f32 %v334, %v335
        %423 = vadd.xlane.f32.xlu0 %v422
        %v424 = vpop.xlane.xlu0 %423
        %v425 = vadd.f32 %v336, %v337
        %426 = vadd.xlane.f32.xlu0 %v425
        %v427 = vpop.xlane.xlu0 %426
        %v428 = vadd.f32 %v338, %v339
        %429 = vadd.xlane.f32.xlu0 %v428
        %v430 = vpop.xlane.xlu0 %429
        %v431 = vadd.f32 %v340, %v341
        %432 = vadd.xlane.f32.xlu0 %v431
        %v433 = vpop.xlane.xlu0 %432
        %v434 = vadd.f32 %v342, %v343
        %435 = vadd.xlane.f32.xlu0 %v434
        %v436 = vpop.xlane.xlu0 %435
        %v437 = vadd.f32 %v344, %v345
        %438 = vadd.xlane.f32.xlu0 %v437
        %v439 = vpop.xlane.xlu0 %438
        %v440 = vadd.f32 %v346, %v347
        %441 = vadd.xlane.f32.xlu0 %v440
        %v442 = vpop.xlane.xlu0 %441
        %v443 = vadd.f32 %v348, %v349
        %444 = vadd.xlane.f32.xlu0 %v443
        %v445 = vpop.xlane.xlu0 %444
        %v446 = vmul.f32 %v286, %v286
        %v447 = vmul.f32 %v287, %v287
        %v448 = vmul.f32 %v288, %v288
        %v449 = vmul.f32 %v289, %v289
        %v450 = vmul.f32 %v290, %v290
        %v451 = vmul.f32 %v291, %v291
        %v452 = vmul.f32 %v292, %v292
        %v453 = vmul.f32 %v293, %v293
        %v454 = vmul.f32 %v294, %v294
        %v455 = vmul.f32 %v295, %v295
        %v456 = vmul.f32 %v296, %v296
        %v457 = vmul.f32 %v297, %v297
        %v458 = vmul.f32 %v298, %v298
        %v459 = vmul.f32 %v299, %v299
        %v460 = vmul.f32 %v300, %v300
        %v461 = vmul.f32 %v301, %v301
        %v462 = vmul.f32 %v302, %v302
        %v463 = vmul.f32 %v303, %v303
        %v464 = vmul.f32 %v304, %v304
        %v465 = vmul.f32 %v305, %v305
        %v466 = vmul.f32 %v306, %v306
        %v467 = vmul.f32 %v307, %v307
        %v468 = vmul.f32 %v308, %v308
        %v469 = vmul.f32 %v309, %v309
        %v470 = vmul.f32 %v310, %v310
        %v471 = vmul.f32 %v311, %v311
        %v472 = vmul.f32 %v312, %v312
        %v473 = vmul.f32 %v313, %v313
        %v474 = vmul.f32 %v314, %v314
        %v475 = vmul.f32 %v315, %v315
        %v476 = vmul.f32 %v316, %v316
        %v477 = vmul.f32 %v317, %v317
        %v478 = vmul.f32 %v318, %v318
        %v479 = vmul.f32 %v319, %v319
        %v480 = vmul.f32 %v320, %v320
        %v481 = vmul.f32 %v321, %v321
        %v482 = vmul.f32 %v322, %v322
        %v483 = vmul.f32 %v323, %v323
        %v484 = vmul.f32 %v324, %v324
        %v485 = vmul.f32 %v325, %v325
        %v486 = vmul.f32 %v326, %v326
        %v487 = vmul.f32 %v327, %v327
        %v488 = vmul.f32 %v328, %v328
        %v489 = vmul.f32 %v329, %v329
        %v490 = vmul.f32 %v330, %v330
        %v491 = vmul.f32 %v331, %v331
        %v492 = vmul.f32 %v332, %v332
        %v493 = vmul.f32 %v333, %v333
        %v494 = vmul.f32 %v334, %v334
        %v495 = vmul.f32 %v335, %v335
        %v496 = vmul.f32 %v336, %v336
        %v497 = vmul.f32 %v337, %v337
        %v498 = vmul.f32 %v338, %v338
        %v499 = vmul.f32 %v339, %v339
        %v500 = vmul.f32 %v340, %v340
        %v501 = vmul.f32 %v341, %v341
        %v502 = vmul.f32 %v342, %v342
        %v503 = vmul.f32 %v343, %v343
        %v504 = vmul.f32 %v344, %v344
        %v505 = vmul.f32 %v345, %v345
        %v506 = vmul.f32 %v346, %v346
        %v507 = vmul.f32 %v347, %v347
        %v508 = vmul.f32 %v348, %v348
        %v509 = vmul.f32 %v349, %v349
        %v510 = vadd.f32 %v446, %v447
        %511 = vadd.xlane.f32.xlu0 %v510
        %v512 = vpop.xlane.xlu0 %511
        %v513 = vadd.f32 %v448, %v449
        %514 = vadd.xlane.f32.xlu0 %v513
        %v515 = vpop.xlane.xlu0 %514
        %v516 = vadd.f32 %v450, %v451
        %517 = vadd.xlane.f32.xlu0 %v516
        %v518 = vpop.xlane.xlu0 %517
        %v519 = vadd.f32 %v452, %v453
        %520 = vadd.xlane.f32.xlu0 %v519
        %v521 = vpop.xlane.xlu0 %520
        %v522 = vadd.f32 %v454, %v455
        %523 = vadd.xlane.f32.xlu0 %v522
        %v524 = vpop.xlane.xlu0 %523
        %v525 = vadd.f32 %v456, %v457
        %526 = vadd.xlane.f32.xlu0 %v525
        %v527 = vpop.xlane.xlu0 %526
        %v528 = vadd.f32 %v458, %v459
        %529 = vadd.xlane.f32.xlu0 %v528
        %v530 = vpop.xlane.xlu0 %529
        %v531 = vadd.f32 %v460, %v461
        %532 = vadd.xlane.f32.xlu0 %v531
        %v533 = vpop.xlane.xlu0 %532
        %v534 = vadd.f32 %v462, %v463
        %535 = vadd.xlane.f32.xlu0 %v534
        %v536 = vpop.xlane.xlu0 %535
        %v537 = vadd.f32 %v464, %v465
        %538 = vadd.xlane.f32.xlu0 %v537
        %v539 = vpop.xlane.xlu0 %538
        %v540 = vadd.f32 %v466, %v467
        %541 = vadd.xlane.f32.xlu0 %v540
        %v542 = vpop.xlane.xlu0 %541
        %v543 = vadd.f32 %v468, %v469
        %544 = vadd.xlane.f32.xlu0 %v543
        %v545 = vpop.xlane.xlu0 %544
        %v546 = vadd.f32 %v470, %v471
        %547 = vadd.xlane.f32.xlu0 %v546
        %v548 = vpop.xlane.xlu0 %547
        %v549 = vadd.f32 %v472, %v473
        %550 = vadd.xlane.f32.xlu0 %v549
        %v551 = vpop.xlane.xlu0 %550
        %v552 = vadd.f32 %v474, %v475
        %553 = vadd.xlane.f32.xlu0 %v552
        %v554 = vpop.xlane.xlu0 %553
        %v555 = vadd.f32 %v476, %v477
        %556 = vadd.xlane.f32.xlu0 %v555
        %v557 = vpop.xlane.xlu0 %556
        %v558 = vadd.f32 %v478, %v479
        %559 = vadd.xlane.f32.xlu0 %v558
        %v560 = vpop.xlane.xlu0 %559
        %v561 = vadd.f32 %v480, %v481
        %562 = vadd.xlane.f32.xlu0 %v561
        %v563 = vpop.xlane.xlu0 %562
        %v564 = vadd.f32 %v482, %v483
        %565 = vadd.xlane.f32.xlu0 %v564
        %v566 = vpop.xlane.xlu0 %565
        %v567 = vadd.f32 %v484, %v485
        %568 = vadd.xlane.f32.xlu0 %v567
        %v569 = vpop.xlane.xlu0 %568
        %v570 = vadd.f32 %v486, %v487
        %571 = vadd.xlane.f32.xlu0 %v570
        %v572 = vpop.xlane.xlu0 %571
        %v573 = vadd.f32 %v488, %v489
        %574 = vadd.xlane.f32.xlu0 %v573
        %v575 = vpop.xlane.xlu0 %574
        %v576 = vadd.f32 %v490, %v491
        %577 = vadd.xlane.f32.xlu0 %v576
        %v578 = vpop.xlane.xlu0 %577
        %v579 = vadd.f32 %v492, %v493
        %580 = vadd.xlane.f32.xlu0 %v579
        %v581 = vpop.xlane.xlu0 %580
        %v582 = vadd.f32 %v494, %v495
        %583 = vadd.xlane.f32.xlu0 %v582
        %v584 = vpop.xlane.xlu0 %583
        %v585 = vadd.f32 %v496, %v497
        %586 = vadd.xlane.f32.xlu0 %v585
        %v587 = vpop.xlane.xlu0 %586
        %v588 = vadd.f32 %v498, %v499
        %589 = vadd.xlane.f32.xlu0 %v588
        %v590 = vpop.xlane.xlu0 %589
        %v591 = vadd.f32 %v500, %v501
        %592 = vadd.xlane.f32.xlu0 %v591
        %v593 = vpop.xlane.xlu0 %592
        %v594 = vadd.f32 %v502, %v503
        %595 = vadd.xlane.f32.xlu0 %v594
        %v596 = vpop.xlane.xlu0 %595
        %v597 = vadd.f32 %v504, %v505
        %598 = vadd.xlane.f32.xlu0 %v597
        %v599 = vpop.xlane.xlu0 %598
        %v600 = vadd.f32 %v506, %v507
        %601 = vadd.xlane.f32.xlu0 %v600
        %v602 = vpop.xlane.xlu0 %601
        %v603 = vadd.f32 %v508, %v509
        %604 = vadd.xlane.f32.xlu0 %v603
        %v605 = vpop.xlane.xlu0 %604
        %v606 = vld [vmem:[%s1] sm:$0xff]
        %v607 = vld [vmem:[%s1 + $0x8] sm:$0xff]
        %v608 = vld [vmem:[%s1 + $0x10] sm:$0xff]
        %v609 = vld [vmem:[%s1 + $0x18] sm:$0xff]
        %v610 = vld [vmem:[%s1 + $0x20] sm:$0xff]
        %v611 = vld [vmem:[%s1 + $0x28] sm:$0xff]
        %v612 = vld [vmem:[%s1 + $0x30] sm:$0xff]
        %v613 = vld [vmem:[%s1 + $0x38] sm:$0xff]
        %v646 = vlaneseq
        %v647 = vand.u32 %v646, 127
        %v648 = vlaneseq
        %v649 = vshrl.u32 %v648, 7
        %v650 = vsub.s32 %v647, %v649
        %v651 = vrot.slane %v352, %v650
        %v652 = vadd.s32 %v647, 4294967288
        %v653 = vlaneseq
        %v654 = vshrl.u32 %v653, 7
        %v655 = vsub.s32 %v652, %v654
        %v656 = vrot.slane %v355, %v655
        %vm657 = vcmask 130112
        %v658 = vsel %vm657, %v656, %v651
        %v659 = vadd.s32 %v647, 4294967280
        %v660 = vlaneseq
        %v661 = vshrl.u32 %v660, 7
        %v662 = vsub.s32 %v659, %v661
        %v663 = vrot.slane %v358, %v662
        %vm664 = vcmask 195712
        %v665 = vsel %vm664, %v663, %v658
        %v666 = vadd.s32 %v647, 4294967272
        %v667 = vlaneseq
        %v668 = vshrl.u32 %v667, 7
        %v669 = vsub.s32 %v666, %v668
        %v670 = vrot.slane %v361, %v669
        %vm671 = vcmask 261312
        %v672 = vsel %vm671, %v670, %v665
        %v673 = vadd.s32 %v647, 4294967264
        %v674 = vlaneseq
        %v675 = vshrl.u32 %v674, 7
        %v676 = vsub.s32 %v673, %v675
        %v677 = vrot.slane %v364, %v676
        %vm678 = vcmask 326912
        %v679 = vsel %vm678, %v677, %v672
        %v680 = vadd.s32 %v647, 4294967256
        %v681 = vlaneseq
        %v682 = vshrl.u32 %v681, 7
        %v683 = vsub.s32 %v680, %v682
        %v684 = vrot.slane %v367, %v683
        %vm685 = vcmask 392512
        %v686 = vsel %vm685, %v684, %v679
        %v687 = vadd.s32 %v647, 4294967248
        %v688 = vlaneseq
        %v689 = vshrl.u32 %v688, 7
        %v690 = vsub.s32 %v687, %v689
        %v691 = vrot.slane %v370, %v690
        %vm692 = vcmask 458112
        %v693 = vsel %vm692, %v691, %v686
        %v694 = vadd.s32 %v647, 4294967240
        %v695 = vlaneseq
        %v696 = vshrl.u32 %v695, 7
        %v697 = vsub.s32 %v694, %v696
        %v698 = vrot.slane %v373, %v697
        %vm699 = vcmask 523712
        %v700 = vsel %vm699, %v698, %v693
        %v701 = vlaneseq
        %v702 = vshrl.u32 %v701, 7
        %v703 = vsub.s32 %v647, %v702
        %v704 = vrot.slane %v376, %v703
        %v705 = vlaneseq
        %v706 = vshrl.u32 %v705, 7
        %v707 = vsub.s32 %v652, %v706
        %v708 = vrot.slane %v379, %v707
        %v709 = vsel %vm657, %v708, %v704
        %v710 = vlaneseq
        %v711 = vshrl.u32 %v710, 7
        %v712 = vsub.s32 %v659, %v711
        %v713 = vrot.slane %v382, %v712
        %v714 = vsel %vm664, %v713, %v709
        %v715 = vlaneseq
        %v716 = vshrl.u32 %v715, 7
        %v717 = vsub.s32 %v666, %v716
        %v718 = vrot.slane %v385, %v717
        %v719 = vsel %vm671, %v718, %v714
        %v720 = vlaneseq
        %v721 = vshrl.u32 %v720, 7
        %v722 = vsub.s32 %v673, %v721
        %v723 = vrot.slane %v388, %v722
        %v724 = vsel %vm678, %v723, %v719
        %v725 = vlaneseq
        %v726 = vshrl.u32 %v725, 7
        %v727 = vsub.s32 %v680, %v726
        %v728 = vrot.slane %v391, %v727
        %v729 = vsel %vm685, %v728, %v724
        %v730 = vlaneseq
        %v731 = vshrl.u32 %v730, 7
        %v732 = vsub.s32 %v687, %v731
        %v733 = vrot.slane %v394, %v732
        %v734 = vsel %vm692, %v733, %v729
        %v735 = vlaneseq
        %v736 = vshrl.u32 %v735, 7
        %v737 = vsub.s32 %v694, %v736
        %v738 = vrot.slane %v397, %v737
        %v739 = vsel %vm699, %v738, %v734
        %v740 = vlaneseq
        %v741 = vshrl.u32 %v740, 7
        %v742 = vsub.s32 %v647, %v741
        %v743 = vrot.slane %v400, %v742
        %v744 = vlaneseq
        %v745 = vshrl.u32 %v744, 7
        %v746 = vsub.s32 %v652, %v745
        %v747 = vrot.slane %v403, %v746
        %v748 = vsel %vm657, %v747, %v743
        %v749 = vlaneseq
        %v750 = vshrl.u32 %v749, 7
        %v751 = vsub.s32 %v659, %v750
        %v752 = vrot.slane %v406, %v751
        %v753 = vsel %vm664, %v752, %v748
        %v754 = vlaneseq
        %v755 = vshrl.u32 %v754, 7
        %v756 = vsub.s32 %v666, %v755
        %v757 = vrot.slane %v409, %v756
        %v758 = vsel %vm671, %v757, %v753
        %v759 = vlaneseq
        %v760 = vshrl.u32 %v759, 7
        %v761 = vsub.s32 %v673, %v760
        %v762 = vrot.slane %v412, %v761
        %v763 = vsel %vm678, %v762, %v758
        %v764 = vlaneseq
        %v765 = vshrl.u32 %v764, 7
        %v766 = vsub.s32 %v680, %v765
        %v767 = vrot.slane %v415, %v766
        %v768 = vsel %vm685, %v767, %v763
        %v769 = vlaneseq
        %v770 = vshrl.u32 %v769, 7
        %v771 = vsub.s32 %v687, %v770
        %v772 = vrot.slane %v418, %v771
        %v773 = vsel %vm692, %v772, %v768
        %v774 = vlaneseq
        %v775 = vshrl.u32 %v774, 7
        %v776 = vsub.s32 %v694, %v775
        %v777 = vrot.slane %v421, %v776
        %v778 = vsel %vm699, %v777, %v773
        %v779 = vlaneseq
        %v780 = vshrl.u32 %v779, 7
        %v781 = vsub.s32 %v647, %v780
        %v782 = vrot.slane %v424, %v781
        %v783 = vlaneseq
        %v784 = vshrl.u32 %v783, 7
        %v785 = vsub.s32 %v652, %v784
        %v786 = vrot.slane %v427, %v785
        %v787 = vsel %vm657, %v786, %v782
        %v788 = vlaneseq
        %v789 = vshrl.u32 %v788, 7
        %v790 = vsub.s32 %v659, %v789
        %v791 = vrot.slane %v430, %v790
        %v792 = vsel %vm664, %v791, %v787
        %v793 = vlaneseq
        %v794 = vshrl.u32 %v793, 7
        %v795 = vsub.s32 %v666, %v794
        %v796 = vrot.slane %v433, %v795
        %v797 = vsel %vm671, %v796, %v792
        %v798 = vlaneseq
        %v799 = vshrl.u32 %v798, 7
        %v800 = vsub.s32 %v673, %v799
        %v801 = vrot.slane %v436, %v800
        %v802 = vsel %vm678, %v801, %v797
        %v803 = vlaneseq
        %v804 = vshrl.u32 %v803, 7
        %v805 = vsub.s32 %v680, %v804
        %v806 = vrot.slane %v439, %v805
        %v807 = vsel %vm685, %v806, %v802
        %v808 = vlaneseq
        %v809 = vshrl.u32 %v808, 7
        %v810 = vsub.s32 %v687, %v809
        %v811 = vrot.slane %v442, %v810
        %v812 = vsel %vm692, %v811, %v807
        %v813 = vlaneseq
        %v814 = vshrl.u32 %v813, 7
        %v815 = vsub.s32 %v694, %v814
        %v816 = vrot.slane %v445, %v815
        %v817 = vsel %vm699, %v816, %v812
        %vm818 = vcmask 1041409
        %v819 = vsel %vm818, %v739, %v700
        %vm820 = vcmask 1042434
        %v821 = vsel %vm820, %v778, %v819
        %vm822 = vcmask 1043459
        %v823 = vsel %vm822, %v817, %v821
        %vm824 = vcmask 523264
        %v825 = vsel %vm824, %v823, 0
        %827 = vmatprep.subr.mxu0 0.0
        %828 = vmatpush1.msra.mxu0 0.0
        %829 = vmatprep.subr.mxu0 0.0
        %830 = vmatpush1.msra.mxu0 0.0
        %831 = vmatprep.subr.mxu0 0.0
        %832 = vmatpush1.msra.mxu0 0.0
        %833 = vmatprep.subr.mxu0 0.0
        %834 = vmatpush1.msra.mxu0 0.0
        %835 = vmatprep.subr.mxu0 0.0
        %836 = vmatpush1.msra.mxu0 0.0
        %837 = vmatprep.subr.mxu0 0.0
        %838 = vmatpush1.msra.mxu0 0.0
        %839 = vmatprep.subr.mxu0 0.0
        %840 = vmatpush1.msra.mxu0 0.0
        %841 = vmatprep.subr.mxu0 0.0
        %842 = vmatpush1.msra.mxu0 0.0
        %843 = vmatprep.subr.mxu0 0.0
        %844 = vmatpush1.msra.mxu0 %v613
        %845 = vmatprep.subr.mxu0 0.0
        %846 = vmatpush1.msra.mxu0 %v612
        %847 = vmatprep.subr.mxu0 0.0
        %848 = vmatpush1.msra.mxu0 %v611
        %849 = vmatprep.subr.mxu0 0.0
        %850 = vmatpush1.msra.mxu0 %v610
        %851 = vmatprep.subr.mxu0 0.0
        %852 = vmatpush1.msra.mxu0 %v609
        %853 = vmatprep.subr.mxu0 0.0
        %854 = vmatpush1.msra.mxu0 %v608
        %855 = vmatprep.subr.mxu0 0.0
        %856 = vmatpush1.msra.mxu0 %v607
        %857 = vmatprep.subr.mxu0 0.0
        %858 = vmatpush1.msra.mxu0 %v606
        %859 = vmatprep.subr.mxu0 0.0
        %860 = vmatpush2.msra.mxu0 0.0
        %861 = vmatprep.subr.mxu0 0.0
        %862 = vmatpush2.msra.mxu0 0.0
        %863 = vmatprep.subr.mxu0 0.0
        %864 = vmatpush2.msra.mxu0 0.0
        %865 = vmatprep.subr.mxu0 0.0
        %866 = vmatpush2.msra.mxu0 0.0
        %867 = vmatprep.subr.mxu0 0.0
        %868 = vmatpush2.msra.mxu0 0.0
        %869 = vmatprep.subr.mxu0 0.0
        %870 = vmatpush2.msra.mxu0 0.0
        %871 = vmatprep.subr.mxu0 0.0
        %872 = vmatpush2.msra.mxu0 0.0
        %873 = vmatprep.subr.mxu0 0.0
        %874 = vmatpush2.msra.mxu0 0.0
        %875 = vmatprep.subr.mxu0 0.0
        %876 = vmatpush2.msra.mxu0 0.0
        %877 = vmatprep.subr.mxu0 0.0
        %878 = vmatpush2.msra.mxu0 0.0
        %879 = vmatprep.subr.mxu0 0.0
        %880 = vmatpush2.msra.mxu0 0.0
        %881 = vmatprep.subr.mxu0 0.0
        %882 = vmatpush2.msra.mxu0 0.0
        %883 = vmatprep.subr.mxu0 0.0
        %884 = vmatpush2.msra.mxu0 0.0
        %885 = vmatprep.subr.mxu0 0.0
        %886 = vmatpush2.msra.mxu0 0.0
        %887 = vmatprep.subr.mxu0 0.0
        %888 = vmatpush2.msra.mxu0 0.0
        %889 = vmatprep.subr.mxu0 0.0
        %890 = vmatpush2.msra.mxu0 0.0
        %891 = vmatprep.mubr.f32.mxu0 0.0
        %892 = vmatmul.mubr.f32.gmra.mxu0 %v825
        %v893 = vpop.f32.mrf.mxu0
        %v894 = vadd.f32 0.0, %v893
        %v895 = vpop.f32.mrf.mxu0
        %896 = vdwg.mxu0
        %v929 = vlaneseq
        %v930 = vshrl.u32 %v929, 7
        %v931 = vsub.s32 %v647, %v930
        %v932 = vrot.slane %v512, %v931
        %v933 = vlaneseq
        %v934 = vshrl.u32 %v933, 7
        %v935 = vsub.s32 %v652, %v934
        %v936 = vrot.slane %v515, %v935
        %v937 = vsel %vm657, %v936, %v932
        %v938 = vlaneseq
        %v939 = vshrl.u32 %v938, 7
        %v940 = vsub.s32 %v659, %v939
        %v941 = vrot.slane %v518, %v940
        %v942 = vsel %vm664, %v941, %v937
        %v943 = vlaneseq
        %v944 = vshrl.u32 %v943, 7
        %v945 = vsub.s32 %v666, %v944
        %v946 = vrot.slane %v521, %v945
        %v947 = vsel %vm671, %v946, %v942
        %v948 = vlaneseq
        %v949 = vshrl.u32 %v948, 7
        %v950 = vsub.s32 %v673, %v949
        %v951 = vrot.slane %v524, %v950
        %v952 = vsel %vm678, %v951, %v947
        %v953 = vlaneseq
        %v954 = vshrl.u32 %v953, 7
        %v955 = vsub.s32 %v680, %v954
        %v956 = vrot.slane %v527, %v955
        %v957 = vsel %vm685, %v956, %v952
        %v958 = vlaneseq
        %v959 = vshrl.u32 %v958, 7
        %v960 = vsub.s32 %v687, %v959
        %v961 = vrot.slane %v530, %v960
        %v962 = vsel %vm692, %v961, %v957
        %v963 = vlaneseq
        %v964 = vshrl.u32 %v963, 7
        %v965 = vsub.s32 %v694, %v964
        %v966 = vrot.slane %v533, %v965
        %v967 = vsel %vm699, %v966, %v962
        %v968 = vlaneseq
        %v969 = vshrl.u32 %v968, 7
        %v970 = vsub.s32 %v647, %v969
        %v971 = vrot.slane %v536, %v970
        %v972 = vlaneseq
        %v973 = vshrl.u32 %v972, 7
        %v974 = vsub.s32 %v652, %v973
        %v975 = vrot.slane %v539, %v974
        %v976 = vsel %vm657, %v975, %v971
        %v977 = vlaneseq
        %v978 = vshrl.u32 %v977, 7
        %v979 = vsub.s32 %v659, %v978
        %v980 = vrot.slane %v542, %v979
        %v981 = vsel %vm664, %v980, %v976
        %v982 = vlaneseq
        %v983 = vshrl.u32 %v982, 7
        %v984 = vsub.s32 %v666, %v983
        %v985 = vrot.slane %v545, %v984
        %v986 = vsel %vm671, %v985, %v981
        %v987 = vlaneseq
        %v988 = vshrl.u32 %v987, 7
        %v989 = vsub.s32 %v673, %v988
        %v990 = vrot.slane %v548, %v989
        %v991 = vsel %vm678, %v990, %v986
        %v992 = vlaneseq
        %v993 = vshrl.u32 %v992, 7
        %v994 = vsub.s32 %v680, %v993
        %v995 = vrot.slane %v551, %v994
        %v996 = vsel %vm685, %v995, %v991
        %v997 = vlaneseq
        %v998 = vshrl.u32 %v997, 7
        %v999 = vsub.s32 %v687, %v998
        %v1000 = vrot.slane %v554, %v999
        %v1001 = vsel %vm692, %v1000, %v996
        %v1002 = vlaneseq
        %v1003 = vshrl.u32 %v1002, 7
        %v1004 = vsub.s32 %v694, %v1003
        %v1005 = vrot.slane %v557, %v1004
        %v1006 = vsel %vm699, %v1005, %v1001
        %v1007 = vlaneseq
        %v1008 = vshrl.u32 %v1007, 7
        %v1009 = vsub.s32 %v647, %v1008
        %v1010 = vrot.slane %v560, %v1009
        %v1011 = vlaneseq
        %v1012 = vshrl.u32 %v1011, 7
        %v1013 = vsub.s32 %v652, %v1012
        %v1014 = vrot.slane %v563, %v1013
        %v1015 = vsel %vm657, %v1014, %v1010
        %v1016 = vlaneseq
        %v1017 = vshrl.u32 %v1016, 7
        %v1018 = vsub.s32 %v659, %v1017
        %v1019 = vrot.slane %v566, %v1018
        %v1020 = vsel %vm664, %v1019, %v1015
        %v1021 = vlaneseq
        %v1022 = vshrl.u32 %v1021, 7
        %v1023 = vsub.s32 %v666, %v1022
        %v1024 = vrot.slane %v569, %v1023
        %v1025 = vsel %vm671, %v1024, %v1020
        %v1026 = vlaneseq
        %v1027 = vshrl.u32 %v1026, 7
        %v1028 = vsub.s32 %v673, %v1027
        %v1029 = vrot.slane %v572, %v1028
        %v1030 = vsel %vm678, %v1029, %v1025
        %v1031 = vlaneseq
        %v1032 = vshrl.u32 %v1031, 7
        %v1033 = vsub.s32 %v680, %v1032
        %v1034 = vrot.slane %v575, %v1033
        %v1035 = vsel %vm685, %v1034, %v1030
        %v1036 = vlaneseq
        %v1037 = vshrl.u32 %v1036, 7
        %v1038 = vsub.s32 %v687, %v1037
        %v1039 = vrot.slane %v578, %v1038
        %v1040 = vsel %vm692, %v1039, %v1035
        %v1041 = vlaneseq
        %v1042 = vshrl.u32 %v1041, 7
        %v1043 = vsub.s32 %v694, %v1042
        %v1044 = vrot.slane %v581, %v1043
        %v1045 = vsel %vm699, %v1044, %v1040
        %v1046 = vlaneseq
        %v1047 = vshrl.u32 %v1046, 7
        %v1048 = vsub.s32 %v647, %v1047
        %v1049 = vrot.slane %v584, %v1048
        %v1050 = vlaneseq
        %v1051 = vshrl.u32 %v1050, 7
        %v1052 = vsub.s32 %v652, %v1051
        %v1053 = vrot.slane %v587, %v1052
        %v1054 = vsel %vm657, %v1053, %v1049
        %v1055 = vlaneseq
        %v1056 = vshrl.u32 %v1055, 7
        %v1057 = vsub.s32 %v659, %v1056
        %v1058 = vrot.slane %v590, %v1057
        %v1059 = vsel %vm664, %v1058, %v1054
        %v1060 = vlaneseq
        %v1061 = vshrl.u32 %v1060, 7
        %v1062 = vsub.s32 %v666, %v1061
        %v1063 = vrot.slane %v593, %v1062
        %v1064 = vsel %vm671, %v1063, %v1059
        %v1065 = vlaneseq
        %v1066 = vshrl.u32 %v1065, 7
        %v1067 = vsub.s32 %v673, %v1066
        %v1068 = vrot.slane %v596, %v1067
        %v1069 = vsel %vm678, %v1068, %v1064
        %v1070 = vlaneseq
        %v1071 = vshrl.u32 %v1070, 7
        %v1072 = vsub.s32 %v680, %v1071
        %v1073 = vrot.slane %v599, %v1072
        %v1074 = vsel %vm685, %v1073, %v1069
        %v1075 = vlaneseq
        %v1076 = vshrl.u32 %v1075, 7
        %v1077 = vsub.s32 %v687, %v1076
        %v1078 = vrot.slane %v602, %v1077
        %v1079 = vsel %vm692, %v1078, %v1074
        %v1080 = vlaneseq
        %v1081 = vshrl.u32 %v1080, 7
        %v1082 = vsub.s32 %v694, %v1081
        %v1083 = vrot.slane %v605, %v1082
        %v1084 = vsel %vm699, %v1083, %v1079
        %v1085 = vsel %vm818, %v1006, %v967
        %v1086 = vsel %vm820, %v1045, %v1085
        %v1087 = vsel %vm822, %v1084, %v1086
        %v1088 = vsel %vm824, %v1087, 0
        %1090 = vmatprep.subr.mxu0 0.0
        %1091 = vmatpush1.msra.mxu0 0.0
        %1092 = vmatprep.subr.mxu0 0.0
        %1093 = vmatpush1.msra.mxu0 0.0
        %1094 = vmatprep.subr.mxu0 0.0
        %1095 = vmatpush1.msra.mxu0 0.0
        %1096 = vmatprep.subr.mxu0 0.0
        %1097 = vmatpush1.msra.mxu0 0.0
        %1098 = vmatprep.subr.mxu0 0.0
        %1099 = vmatpush1.msra.mxu0 0.0
        %1100 = vmatprep.subr.mxu0 0.0
        %1101 = vmatpush1.msra.mxu0 0.0
        %1102 = vmatprep.subr.mxu0 0.0
        %1103 = vmatpush1.msra.mxu0 0.0
        %1104 = vmatprep.subr.mxu0 0.0
        %1105 = vmatpush1.msra.mxu0 0.0
        %1106 = vmatprep.subr.mxu0 0.0
        %1107 = vmatpush1.msra.mxu0 %v613
        %1108 = vmatprep.subr.mxu0 0.0
        %1109 = vmatpush1.msra.mxu0 %v612
        %1110 = vmatprep.subr.mxu0 0.0
        %1111 = vmatpush1.msra.mxu0 %v611
        %1112 = vmatprep.subr.mxu0 0.0
        %1113 = vmatpush1.msra.mxu0 %v610
        %1114 = vmatprep.subr.mxu0 0.0
        %1115 = vmatpush1.msra.mxu0 %v609
        %1116 = vmatprep.subr.mxu0 0.0
        %1117 = vmatpush1.msra.mxu0 %v608
        %1118 = vmatprep.subr.mxu0 0.0
        %1119 = vmatpush1.msra.mxu0 %v607
        %1120 = vmatprep.subr.mxu0 0.0
        %1121 = vmatpush1.msra.mxu0 %v606
        %1122 = vmatprep.subr.mxu0 0.0
        %1123 = vmatpush2.msra.mxu0 0.0
        %1124 = vmatprep.subr.mxu0 0.0
        %1125 = vmatpush2.msra.mxu0 0.0
        %1126 = vmatprep.subr.mxu0 0.0
        %1127 = vmatpush2.msra.mxu0 0.0
        %1128 = vmatprep.subr.mxu0 0.0
        %1129 = vmatpush2.msra.mxu0 0.0
        %1130 = vmatprep.subr.mxu0 0.0
        %1131 = vmatpush2.msra.mxu0 0.0
        %1132 = vmatprep.subr.mxu0 0.0
        %1133 = vmatpush2.msra.mxu0 0.0
        %1134 = vmatprep.subr.mxu0 0.0
        %1135 = vmatpush2.msra.mxu0 0.0
        %1136 = vmatprep.subr.mxu0 0.0
        %1137 = vmatpush2.msra.mxu0 0.0
        %1138 = vmatprep.subr.mxu0 0.0
        %1139 = vmatpush2.msra.mxu0 0.0
        %1140 = vmatprep.subr.mxu0 0.0
        %1141 = vmatpush2.msra.mxu0 0.0
        %1142 = vmatprep.subr.mxu0 0.0
        %1143 = vmatpush2.msra.mxu0 0.0
        %1144 = vmatprep.subr.mxu0 0.0
        %1145 = vmatpush2.msra.mxu0 0.0
        %1146 = vmatprep.subr.mxu0 0.0
        %1147 = vmatpush2.msra.mxu0 0.0
        %1148 = vmatprep.subr.mxu0 0.0
        %1149 = vmatpush2.msra.mxu0 0.0
        %1150 = vmatprep.subr.mxu0 0.0
        %1151 = vmatpush2.msra.mxu0 0.0
        %1152 = vmatprep.subr.mxu0 0.0
        %1153 = vmatpush2.msra.mxu0 0.0
        %1154 = vmatprep.mubr.f32.mxu0 0.0
        %1155 = vmatmul.mubr.f32.gmra.mxu0 %v1088
        %v1156 = vpop.f32.mrf.mxu0
        %v1157 = vadd.f32 0.0, %v1156
        %v1158 = vpop.f32.mrf.mxu0
        %1159 = vdwg.mxu0
        %v1160 = vmul.f32 %v894, 0.001953125
        %v1161 = vmul.f32 %v1157, 0.001953125
        %v1162 = vmul.f32 %v1160, %v1160
        %v1163 = vsub.f32 %v1161, %v1162
        %v1164 = vmax.f32 %v1163, 0.0
        %v1165 = vadd.f32 %v1164, 1e-05
        %v1166 = vrsqrt.pop %v1165
        %v1167 = vld [vmem:[#allocation5] sm:$0xff]
        %v1168 = vld [vmem:[#allocation5 + $0x8] sm:$0xff]
        %v1169 = vld [vmem:[#allocation5 + $0x10] sm:$0xff]
        %v1170 = vld [vmem:[#allocation5 + $0x18] sm:$0xff]
        %vm1171 = vcmask 261120
        %v1173 = vsel %vm1171, %v1160, 0
        %1175 = vmatprep.subr.mxu0 0.0
        %1176 = vmatpush1.msra.mxu0 0.0
        %1177 = vmatprep.subr.mxu0 0.0
        %1178 = vmatpush1.msra.mxu0 0.0
        %1179 = vmatprep.subr.mxu0 0.0
        %1180 = vmatpush1.msra.mxu0 0.0
        %1181 = vmatprep.subr.mxu0 0.0
        %1182 = vmatpush1.msra.mxu0 0.0
        %1183 = vmatprep.subr.mxu0 0.0
        %1184 = vmatpush1.msra.mxu0 0.0
        %1185 = vmatprep.subr.mxu0 0.0
        %1186 = vmatpush1.msra.mxu0 0.0
        %1187 = vmatprep.subr.mxu0 0.0
        %1188 = vmatpush1.msra.mxu0 0.0
        %1189 = vmatprep.subr.mxu0 0.0
        %1190 = vmatpush1.msra.mxu0 0.0
        %1191 = vmatprep.subr.mxu0 0.0
        %1192 = vmatpush1.msra.mxu0 0.0
        %1193 = vmatprep.subr.mxu0 0.0
        %1194 = vmatpush1.msra.mxu0 0.0
        %1195 = vmatprep.subr.mxu0 0.0
        %1196 = vmatpush1.msra.mxu0 0.0
        %1197 = vmatprep.subr.mxu0 0.0
        %1198 = vmatpush1.msra.mxu0 0.0
        %1199 = vmatprep.subr.mxu0 0.0
        %1200 = vmatpush1.msra.mxu0 %v1170
        %1201 = vmatprep.subr.mxu0 0.0
        %1202 = vmatpush1.msra.mxu0 %v1169
        %1203 = vmatprep.subr.mxu0 0.0
        %1204 = vmatpush1.msra.mxu0 %v1168
        %1205 = vmatprep.subr.mxu0 0.0
        %1206 = vmatpush1.msra.mxu0 %v1167
        %1207 = vmatprep.subr.mxu0 0.0
        %1208 = vmatpush2.msra.mxu0 0.0
        %1209 = vmatprep.subr.mxu0 0.0
        %1210 = vmatpush2.msra.mxu0 0.0
        %1211 = vmatprep.subr.mxu0 0.0
        %1212 = vmatpush2.msra.mxu0 0.0
        %1213 = vmatprep.subr.mxu0 0.0
        %1214 = vmatpush2.msra.mxu0 0.0
        %1215 = vmatprep.subr.mxu0 0.0
        %1216 = vmatpush2.msra.mxu0 0.0
        %1217 = vmatprep.subr.mxu0 0.0
        %1218 = vmatpush2.msra.mxu0 0.0
        %1219 = vmatprep.subr.mxu0 0.0
        %1220 = vmatpush2.msra.mxu0 0.0
        %1221 = vmatprep.subr.mxu0 0.0
        %1222 = vmatpush2.msra.mxu0 0.0
        %1223 = vmatprep.subr.mxu0 0.0
        %1224 = vmatpush2.msra.mxu0 0.0
        %1225 = vmatprep.subr.mxu0 0.0
        %1226 = vmatpush2.msra.mxu0 0.0
        %1227 = vmatprep.subr.mxu0 0.0
        %1228 = vmatpush2.msra.mxu0 0.0
        %1229 = vmatprep.subr.mxu0 0.0
        %1230 = vmatpush2.msra.mxu0 0.0
        %1231 = vmatprep.subr.mxu0 0.0
        %1232 = vmatpush2.msra.mxu0 0.0
        %1233 = vmatprep.subr.mxu0 0.0
        %1234 = vmatpush2.msra.mxu0 0.0
        %1235 = vmatprep.subr.mxu0 0.0
        %1236 = vmatpush2.msra.mxu0 0.0
        %1237 = vmatprep.subr.mxu0 0.0
        %1238 = vmatpush2.msra.mxu0 0.0
        %1239 = vmatprep.mubr.f32.mxu0 0.0
        %1240 = vmatmul.mubr.f32.gmra.mxu0 %v1173
        %v1241 = vpop.f32.mrf.mxu0
        %v1242 = vadd.f32 0.0, %v1241
        %v1243 = vpop.f32.mrf.mxu0
        %1244 = vdwg.mxu0
        %v1246 = vsel %vm1171, %v1166, 0
        %1248 = vmatprep.subr.mxu0 0.0
        %1249 = vmatpush1.msra.mxu0 0.0
        %1250 = vmatprep.subr.mxu0 0.0
        %1251 = vmatpush1.msra.mxu0 0.0
        %1252 = vmatprep.subr.mxu0 0.0
        %1253 = vmatpush1.msra.mxu0 0.0
        %1254 = vmatprep.subr.mxu0 0.0
        %1255 = vmatpush1.msra.mxu0 0.0
        %1256 = vmatprep.subr.mxu0 0.0
        %1257 = vmatpush1.msra.mxu0 0.0
        %1258 = vmatprep.subr.mxu0 0.0
        %1259 = vmatpush1.msra.mxu0 0.0
        %1260 = vmatprep.subr.mxu0 0.0
        %1261 = vmatpush1.msra.mxu0 0.0
        %1262 = vmatprep.subr.mxu0 0.0
        %1263 = vmatpush1.msra.mxu0 0.0
        %1264 = vmatprep.subr.mxu0 0.0
        %1265 = vmatpush1.msra.mxu0 0.0
        %1266 = vmatprep.subr.mxu0 0.0
        %1267 = vmatpush1.msra.mxu0 0.0
        %1268 = vmatprep.subr.mxu0 0.0
        %1269 = vmatpush1.msra.mxu0 0.0
        %1270 = vmatprep.subr.mxu0 0.0
        %1271 = vmatpush1.msra.mxu0 0.0
        %1272 = vmatprep.subr.mxu0 0.0
        %1273 = vmatpush1.msra.mxu0 %v1170
        %1274 = vmatprep.subr.mxu0 0.0
        %1275 = vmatpush1.msra.mxu0 %v1169
        %1276 = vmatprep.subr.mxu0 0.0
        %1277 = vmatpush1.msra.mxu0 %v1168
        %1278 = vmatprep.subr.mxu0 0.0
        %1279 = vmatpush1.msra.mxu0 %v1167
        %1280 = vmatprep.subr.mxu0 0.0
        %1281 = vmatpush2.msra.mxu0 0.0
        %1282 = vmatprep.subr.mxu0 0.0
        %1283 = vmatpush2.msra.mxu0 0.0
        %1284 = vmatprep.subr.mxu0 0.0
        %1285 = vmatpush2.msra.mxu0 0.0
        %1286 = vmatprep.subr.mxu0 0.0
        %1287 = vmatpush2.msra.mxu0 0.0
        %1288 = vmatprep.subr.mxu0 0.0
        %1289 = vmatpush2.msra.mxu0 0.0
        %1290 = vmatprep.subr.mxu0 0.0
        %1291 = vmatpush2.msra.mxu0 0.0
        %1292 = vmatprep.subr.mxu0 0.0
        %1293 = vmatpush2.msra.mxu0 0.0
        %1294 = vmatprep.subr.mxu0 0.0
        %1295 = vmatpush2.msra.mxu0 0.0
        %1296 = vmatprep.subr.mxu0 0.0
        %1297 = vmatpush2.msra.mxu0 0.0
        %1298 = vmatprep.subr.mxu0 0.0
        %1299 = vmatpush2.msra.mxu0 0.0
        %1300 = vmatprep.subr.mxu0 0.0
        %1301 = vmatpush2.msra.mxu0 0.0
        %1302 = vmatprep.subr.mxu0 0.0
        %1303 = vmatpush2.msra.mxu0 0.0
        %1304 = vmatprep.subr.mxu0 0.0
        %1305 = vmatpush2.msra.mxu0 0.0
        %1306 = vmatprep.subr.mxu0 0.0
        %1307 = vmatpush2.msra.mxu0 0.0
        %1308 = vmatprep.subr.mxu0 0.0
        %1309 = vmatpush2.msra.mxu0 0.0
        %1310 = vmatprep.subr.mxu0 0.0
        %1311 = vmatpush2.msra.mxu0 0.0
        %1312 = vmatprep.mubr.f32.mxu0 0.0
        %1313 = vmatmul.mubr.f32.gmra.mxu0 %v1246
        %v1314 = vpop.f32.mrf.mxu0
        %v1315 = vadd.f32 0.0, %v1314
        %v1316 = vpop.f32.mrf.mxu0
        %1317 = vdwg.mxu0
        %v1318 = vld [vmem:[#allocation7] sm:$0x1]
        %v1320 = vlaneseq
        %v1321 = vshrl.u32 %v1320, 7
        %v1322 = vsub.s32 0, %v1321
        %v1323 = vrot.slane %v1318, %v1322
        %v1325 = vmul.f32 %v1315, %v1323
        %v1326 = vld [vmem:[#allocation8] sm:$0x1]
        %v1327 = vmul.f32 %v1242, %v1325
        %v1329 = vlaneseq
        %v1330 = vshrl.u32 %v1329, 7
        %v1331 = vsub.s32 0, %v1330
        %v1332 = vrot.slane %v1326, %v1331
        %v1334 = vsub.f32 %v1332, %v1327
        %v1335 = vlaneseq
        %v1336 = vshrl.u32 %v1335, 7
        %v1337 = vsub.s32 0, %v1336
        %v1338 = vrot.slane %v1325, %v1337
        %1340 = vbcast.lane.b32.xlu0 %v1338, 256
        %v1341 = vpop.permute.xlu0 %1340
        %s1343 = sor.u32 256, 8
        %1344 = vbcast.lane.b32.xlu0 %v1338, %s1343
        %v1345 = vpop.permute.xlu0 %1344
        %s1347 = sor.u32 256, 16
        %1348 = vbcast.lane.b32.xlu0 %v1338, %s1347
        %v1349 = vpop.permute.xlu0 %1348
        %s1351 = sor.u32 256, 24
        %1352 = vbcast.lane.b32.xlu0 %v1338, %s1351
        %v1353 = vpop.permute.xlu0 %1352
        %s1355 = sor.u32 256, 32
        %1356 = vbcast.lane.b32.xlu0 %v1338, %s1355
        %v1357 = vpop.permute.xlu0 %1356
        %s1359 = sor.u32 256, 40
        %1360 = vbcast.lane.b32.xlu0 %v1338, %s1359
        %v1361 = vpop.permute.xlu0 %1360
        %s1363 = sor.u32 256, 48
        %1364 = vbcast.lane.b32.xlu0 %v1338, %s1363
        %v1365 = vpop.permute.xlu0 %1364
        %s1367 = sor.u32 256, 56
        %1368 = vbcast.lane.b32.xlu0 %v1338, %s1367
        %v1369 = vpop.permute.xlu0 %1368
        %v1370 = vlaneseq
        %v1371 = vshrl.u32 %v1370, 7
        %v1372 = vsub.s32 1, %v1371
        %v1373 = vrot.slane %v1325, %v1372
        %1375 = vbcast.lane.b32.xlu0 %v1373, 256
        %v1376 = vpop.permute.xlu0 %1375
        %s1378 = sor.u32 256, 8
        %1379 = vbcast.lane.b32.xlu0 %v1373, %s1378
        %v1380 = vpop.permute.xlu0 %1379
        %s1382 = sor.u32 256, 16
        %1383 = vbcast.lane.b32.xlu0 %v1373, %s1382
        %v1384 = vpop.permute.xlu0 %1383
        %s1386 = sor.u32 256, 24
        %1387 = vbcast.lane.b32.xlu0 %v1373, %s1386
        %v1388 = vpop.permute.xlu0 %1387
        %s1390 = sor.u32 256, 32
        %1391 = vbcast.lane.b32.xlu0 %v1373, %s1390
        %v1392 = vpop.permute.xlu0 %1391
        %s1394 = sor.u32 256, 40
        %1395 = vbcast.lane.b32.xlu0 %v1373, %s1394
        %v1396 = vpop.permute.xlu0 %1395
        %s1398 = sor.u32 256, 48
        %1399 = vbcast.lane.b32.xlu0 %v1373, %s1398
        %v1400 = vpop.permute.xlu0 %1399
        %s1402 = sor.u32 256, 56
        %1403 = vbcast.lane.b32.xlu0 %v1373, %s1402
        %v1404 = vpop.permute.xlu0 %1403
        %v1405 = vlaneseq
        %v1406 = vshrl.u32 %v1405, 7
        %v1407 = vsub.s32 2, %v1406
        %v1408 = vrot.slane %v1325, %v1407
        %1410 = vbcast.lane.b32.xlu0 %v1408, 256
        %v1411 = vpop.permute.xlu0 %1410
        %s1413 = sor.u32 256, 8
        %1414 = vbcast.lane.b32.xlu0 %v1408, %s1413
        %v1415 = vpop.permute.xlu0 %1414
        %s1417 = sor.u32 256, 16
        %1418 = vbcast.lane.b32.xlu0 %v1408, %s1417
        %v1419 = vpop.permute.xlu0 %1418
        %s1421 = sor.u32 256, 24
        %1422 = vbcast.lane.b32.xlu0 %v1408, %s1421
        %v1423 = vpop.permute.xlu0 %1422
        %s1425 = sor.u32 256, 32
        %1426 = vbcast.lane.b32.xlu0 %v1408, %s1425
        %v1427 = vpop.permute.xlu0 %1426
        %s1429 = sor.u32 256, 40
        %1430 = vbcast.lane.b32.xlu0 %v1408, %s1429
        %v1431 = vpop.permute.xlu0 %1430
        %s1433 = sor.u32 256, 48
        %1434 = vbcast.lane.b32.xlu0 %v1408, %s1433
        %v1435 = vpop.permute.xlu0 %1434
        %s1437 = sor.u32 256, 56
        %1438 = vbcast.lane.b32.xlu0 %v1408, %s1437
        %v1439 = vpop.permute.xlu0 %1438
        %v1440 = vlaneseq
        %v1441 = vshrl.u32 %v1440, 7
        %v1442 = vsub.s32 3, %v1441
        %v1443 = vrot.slane %v1325, %v1442
        %1445 = vbcast.lane.b32.xlu0 %v1443, 256
        %v1446 = vpop.permute.xlu0 %1445
        %s1448 = sor.u32 256, 8
        %1449 = vbcast.lane.b32.xlu0 %v1443, %s1448
        %v1450 = vpop.permute.xlu0 %1449
        %s1452 = sor.u32 256, 16
        %1453 = vbcast.lane.b32.xlu0 %v1443, %s1452
        %v1454 = vpop.permute.xlu0 %1453
        %s1456 = sor.u32 256, 24
        %1457 = vbcast.lane.b32.xlu0 %v1443, %s1456
        %v1458 = vpop.permute.xlu0 %1457
        %s1460 = sor.u32 256, 32
        %1461 = vbcast.lane.b32.xlu0 %v1443, %s1460
        %v1462 = vpop.permute.xlu0 %1461
        %s1464 = sor.u32 256, 40
        %1465 = vbcast.lane.b32.xlu0 %v1443, %s1464
        %v1466 = vpop.permute.xlu0 %1465
        %s1468 = sor.u32 256, 48
        %1469 = vbcast.lane.b32.xlu0 %v1443, %s1468
        %v1470 = vpop.permute.xlu0 %1469
        %s1472 = sor.u32 256, 56
        %1473 = vbcast.lane.b32.xlu0 %v1443, %s1472
        %v1474 = vpop.permute.xlu0 %1473
        %v1475 = vmul.f32 %v286, %v1341
        %v1476 = vmul.f32 %v287, %v1341
        %v1477 = vmul.f32 %v288, %v1345
        %v1478 = vmul.f32 %v289, %v1345
        %v1479 = vmul.f32 %v290, %v1349
        %v1480 = vmul.f32 %v291, %v1349
        %v1481 = vmul.f32 %v292, %v1353
        %v1482 = vmul.f32 %v293, %v1353
        %v1483 = vmul.f32 %v294, %v1357
        %v1484 = vmul.f32 %v295, %v1357
        %v1485 = vmul.f32 %v296, %v1361
        %v1486 = vmul.f32 %v297, %v1361
        %v1487 = vmul.f32 %v298, %v1365
        %v1488 = vmul.f32 %v299, %v1365
        %v1489 = vmul.f32 %v300, %v1369
        %v1490 = vmul.f32 %v301, %v1369
        %v1491 = vmul.f32 %v302, %v1376
        %v1492 = vmul.f32 %v303, %v1376
        %v1493 = vmul.f32 %v304, %v1380
        %v1494 = vmul.f32 %v305, %v1380
        %v1495 = vmul.f32 %v306, %v1384
        %v1496 = vmul.f32 %v307, %v1384
        %v1497 = vmul.f32 %v308, %v1388
        %v1498 = vmul.f32 %v309, %v1388
        %v1499 = vmul.f32 %v310, %v1392
        %v1500 = vmul.f32 %v311, %v1392
        %v1501 = vmul.f32 %v312, %v1396
        %v1502 = vmul.f32 %v313, %v1396
        %v1503 = vmul.f32 %v314, %v1400
        %v1504 = vmul.f32 %v315, %v1400
        %v1505 = vmul.f32 %v316, %v1404
        %v1506 = vmul.f32 %v317, %v1404
        %v1507 = vmul.f32 %v318, %v1411
        %v1508 = vmul.f32 %v319, %v1411
        %v1509 = vmul.f32 %v320, %v1415
        %v1510 = vmul.f32 %v321, %v1415
        %v1511 = vmul.f32 %v322, %v1419
        %v1512 = vmul.f32 %v323, %v1419
        %v1513 = vmul.f32 %v324, %v1423
        %v1514 = vmul.f32 %v325, %v1423
        %v1515 = vmul.f32 %v326, %v1427
        %v1516 = vmul.f32 %v327, %v1427
        %v1517 = vmul.f32 %v328, %v1431
        %v1518 = vmul.f32 %v329, %v1431
        %v1519 = vmul.f32 %v330, %v1435
        %v1520 = vmul.f32 %v331, %v1435
        %v1521 = vmul.f32 %v332, %v1439
        %v1522 = vmul.f32 %v333, %v1439
        %v1523 = vmul.f32 %v334, %v1446
        %v1524 = vmul.f32 %v335, %v1446
        %v1525 = vmul.f32 %v336, %v1450
        %v1526 = vmul.f32 %v337, %v1450
        %v1527 = vmul.f32 %v338, %v1454
        %v1528 = vmul.f32 %v339, %v1454
        %v1529 = vmul.f32 %v340, %v1458
        %v1530 = vmul.f32 %v341, %v1458
        %v1531 = vmul.f32 %v342, %v1462
        %v1532 = vmul.f32 %v343, %v1462
        %v1533 = vmul.f32 %v344, %v1466
        %v1534 = vmul.f32 %v345, %v1466
        %v1535 = vmul.f32 %v346, %v1470
        %v1536 = vmul.f32 %v347, %v1470
        %v1537 = vmul.f32 %v348, %v1474
        %v1538 = vmul.f32 %v349, %v1474
        %v1539 = vlaneseq
        %v1540 = vshrl.u32 %v1539, 7
        %v1541 = vsub.s32 0, %v1540
        %v1542 = vrot.slane %v1334, %v1541
        %1544 = vbcast.lane.b32.xlu0 %v1542, 256
        %v1545 = vpop.permute.xlu0 %1544
        %s1547 = sor.u32 256, 8
        %1548 = vbcast.lane.b32.xlu0 %v1542, %s1547
        %v1549 = vpop.permute.xlu0 %1548
        %s1551 = sor.u32 256, 16
        %1552 = vbcast.lane.b32.xlu0 %v1542, %s1551
        %v1553 = vpop.permute.xlu0 %1552
        %s1555 = sor.u32 256, 24
        %1556 = vbcast.lane.b32.xlu0 %v1542, %s1555
        %v1557 = vpop.permute.xlu0 %1556
        %s1559 = sor.u32 256, 32
        %1560 = vbcast.lane.b32.xlu0 %v1542, %s1559
        %v1561 = vpop.permute.xlu0 %1560
        %s1563 = sor.u32 256, 40
        %1564 = vbcast.lane.b32.xlu0 %v1542, %s1563
        %v1565 = vpop.permute.xlu0 %1564
        %s1567 = sor.u32 256, 48
        %1568 = vbcast.lane.b32.xlu0 %v1542, %s1567
        %v1569 = vpop.permute.xlu0 %1568
        %s1571 = sor.u32 256, 56
        %1572 = vbcast.lane.b32.xlu0 %v1542, %s1571
        %v1573 = vpop.permute.xlu0 %1572
        %v1574 = vlaneseq
        %v1575 = vshrl.u32 %v1574, 7
        %v1576 = vsub.s32 1, %v1575
        %v1577 = vrot.slane %v1334, %v1576
        %1579 = vbcast.lane.b32.xlu0 %v1577, 256
        %v1580 = vpop.permute.xlu0 %1579
        %s1582 = sor.u32 256, 8
        %1583 = vbcast.lane.b32.xlu0 %v1577, %s1582
        %v1584 = vpop.permute.xlu0 %1583
        %s1586 = sor.u32 256, 16
        %1587 = vbcast.lane.b32.xlu0 %v1577, %s1586
        %v1588 = vpop.permute.xlu0 %1587
        %s1590 = sor.u32 256, 24
        %1591 = vbcast.lane.b32.xlu0 %v1577, %s1590
        %v1592 = vpop.permute.xlu0 %1591
        %s1594 = sor.u32 256, 32
        %1595 = vbcast.lane.b32.xlu0 %v1577, %s1594
        %v1596 = vpop.permute.xlu0 %1595
        %s1598 = sor.u32 256, 40
        %1599 = vbcast.lane.b32.xlu0 %v1577, %s1598
        %v1600 = vpop.permute.xlu0 %1599
        %s1602 = sor.u32 256, 48
        %1603 = vbcast.lane.b32.xlu0 %v1577, %s1602
        %v1604 = vpop.permute.xlu0 %1603
        %s1606 = sor.u32 256, 56
        %1607 = vbcast.lane.b32.xlu0 %v1577, %s1606
        %v1608 = vpop.permute.xlu0 %1607
        %v1609 = vlaneseq
        %v1610 = vshrl.u32 %v1609, 7
        %v1611 = vsub.s32 2, %v1610
        %v1612 = vrot.slane %v1334, %v1611
        %1614 = vbcast.lane.b32.xlu0 %v1612, 256
        %v1615 = vpop.permute.xlu0 %1614
        %s1617 = sor.u32 256, 8
        %1618 = vbcast.lane.b32.xlu0 %v1612, %s1617
        %v1619 = vpop.permute.xlu0 %1618
        %s1621 = sor.u32 256, 16
        %1622 = vbcast.lane.b32.xlu0 %v1612, %s1621
        %v1623 = vpop.permute.xlu0 %1622
        %s1625 = sor.u32 256, 24
        %1626 = vbcast.lane.b32.xlu0 %v1612, %s1625
        %v1627 = vpop.permute.xlu0 %1626
        %s1629 = sor.u32 256, 32
        %1630 = vbcast.lane.b32.xlu0 %v1612, %s1629
        %v1631 = vpop.permute.xlu0 %1630
        %s1633 = sor.u32 256, 40
        %1634 = vbcast.lane.b32.xlu0 %v1612, %s1633
        %v1635 = vpop.permute.xlu0 %1634
        %s1637 = sor.u32 256, 48
        %1638 = vbcast.lane.b32.xlu0 %v1612, %s1637
        %v1639 = vpop.permute.xlu0 %1638
        %s1641 = sor.u32 256, 56
        %1642 = vbcast.lane.b32.xlu0 %v1612, %s1641
        %v1643 = vpop.permute.xlu0 %1642
        %v1644 = vlaneseq
        %v1645 = vshrl.u32 %v1644, 7
        %v1646 = vsub.s32 3, %v1645
        %v1647 = vrot.slane %v1334, %v1646
        %1649 = vbcast.lane.b32.xlu0 %v1647, 256
        %v1650 = vpop.permute.xlu0 %1649
        %s1652 = sor.u32 256, 8
        %1653 = vbcast.lane.b32.xlu0 %v1647, %s1652
        %v1654 = vpop.permute.xlu0 %1653
        %s1656 = sor.u32 256, 16
        %1657 = vbcast.lane.b32.xlu0 %v1647, %s1656
        %v1658 = vpop.permute.xlu0 %1657
        %s1660 = sor.u32 256, 24
        %1661 = vbcast.lane.b32.xlu0 %v1647, %s1660
        %v1662 = vpop.permute.xlu0 %1661
        %s1664 = sor.u32 256, 32
        %1665 = vbcast.lane.b32.xlu0 %v1647, %s1664
        %v1666 = vpop.permute.xlu0 %1665
        %s1668 = sor.u32 256, 40
        %1669 = vbcast.lane.b32.xlu0 %v1647, %s1668
        %v1670 = vpop.permute.xlu0 %1669
        %s1672 = sor.u32 256, 48
        %1673 = vbcast.lane.b32.xlu0 %v1647, %s1672
        %v1674 = vpop.permute.xlu0 %1673
        %s1676 = sor.u32 256, 56
        %1677 = vbcast.lane.b32.xlu0 %v1647, %s1676
        %v1678 = vpop.permute.xlu0 %1677
        %v1679 = vadd.f32 %v1475, %v1545
        %v1680 = vadd.f32 %v1476, %v1545
        %v1681 = vadd.f32 %v1477, %v1549
        %v1682 = vadd.f32 %v1478, %v1549
        %v1683 = vadd.f32 %v1479, %v1553
        %v1684 = vadd.f32 %v1480, %v1553
        %v1685 = vadd.f32 %v1481, %v1557
        %v1686 = vadd.f32 %v1482, %v1557
        %v1687 = vadd.f32 %v1483, %v1561
        %v1688 = vadd.f32 %v1484, %v1561
        %v1689 = vadd.f32 %v1485, %v1565
        %v1690 = vadd.f32 %v1486, %v1565
        %v1691 = vadd.f32 %v1487, %v1569
        %v1692 = vadd.f32 %v1488, %v1569
        %v1693 = vadd.f32 %v1489, %v1573
        %v1694 = vadd.f32 %v1490, %v1573
        %v1695 = vadd.f32 %v1491, %v1580
        %v1696 = vadd.f32 %v1492, %v1580
        %v1697 = vadd.f32 %v1493, %v1584
        %v1698 = vadd.f32 %v1494, %v1584
        %v1699 = vadd.f32 %v1495, %v1588
        %v1700 = vadd.f32 %v1496, %v1588
        %v1701 = vadd.f32 %v1497, %v1592
        %v1702 = vadd.f32 %v1498, %v1592
        %v1703 = vadd.f32 %v1499, %v1596
        %v1704 = vadd.f32 %v1500, %v1596
        %v1705 = vadd.f32 %v1501, %v1600
        %v1706 = vadd.f32 %v1502, %v1600
        %v1707 = vadd.f32 %v1503, %v1604
        %v1708 = vadd.f32 %v1504, %v1604
        %v1709 = vadd.f32 %v1505, %v1608
        %v1710 = vadd.f32 %v1506, %v1608
        %v1711 = vadd.f32 %v1507, %v1615
        %v1712 = vadd.f32 %v1508, %v1615
        %v1713 = vadd.f32 %v1509, %v1619
        %v1714 = vadd.f32 %v1510, %v1619
        %v1715 = vadd.f32 %v1511, %v1623
        %v1716 = vadd.f32 %v1512, %v1623
        %v1717 = vadd.f32 %v1513, %v1627
        %v1718 = vadd.f32 %v1514, %v1627
        %v1719 = vadd.f32 %v1515, %v1631
        %v1720 = vadd.f32 %v1516, %v1631
        %v1721 = vadd.f32 %v1517, %v1635
        %v1722 = vadd.f32 %v1518, %v1635
        %v1723 = vadd.f32 %v1519, %v1639
        %v1724 = vadd.f32 %v1520, %v1639
        %v1725 = vadd.f32 %v1521, %v1643
        %v1726 = vadd.f32 %v1522, %v1643
        %v1727 = vadd.f32 %v1523, %v1650
        %v1728 = vadd.f32 %v1524, %v1650
        %v1729 = vadd.f32 %v1525, %v1654
        %v1730 = vadd.f32 %v1526, %v1654
        %v1731 = vadd.f32 %v1527, %v1658
        %v1732 = vadd.f32 %v1528, %v1658
        %v1733 = vadd.f32 %v1529, %v1662
        %v1734 = vadd.f32 %v1530, %v1662
        %v1735 = vadd.f32 %v1531, %v1666
        %v1736 = vadd.f32 %v1532, %v1666
        %v1737 = vadd.f32 %v1533, %v1670
        %v1738 = vadd.f32 %v1534, %v1670
        %v1739 = vadd.f32 %v1535, %v1674
        %v1740 = vadd.f32 %v1536, %v1674
        %v1741 = vadd.f32 %v1537, %v1678
        %v1742 = vadd.f32 %v1538, %v1678
        %1743 = vst [vmem:[%s283] sm:$0xff] %v1679
        %1744 = vst [vmem:[%s283 + $0x8] sm:$0xff] %v1680
        %1745 = vst [vmem:[%s283 + $0x10] sm:$0xff] %v1681
        %1746 = vst [vmem:[%s283 + $0x18] sm:$0xff] %v1682
        %1747 = vst [vmem:[%s283 + $0x20] sm:$0xff] %v1683
        %1748 = vst [vmem:[%s283 + $0x28] sm:$0xff] %v1684
        %1749 = vst [vmem:[%s283 + $0x30] sm:$0xff] %v1685
        %1750 = vst [vmem:[%s283 + $0x38] sm:$0xff] %v1686
        %1751 = vst [vmem:[%s283 + $0x40] sm:$0xff] %v1687
        %1752 = vst [vmem:[%s283 + $0x48] sm:$0xff] %v1688
        %1753 = vst [vmem:[%s283 + $0x50] sm:$0xff] %v1689
        %1754 = vst [vmem:[%s283 + $0x58] sm:$0xff] %v1690
        %1755 = vst [vmem:[%s283 + $0x60] sm:$0xff] %v1691
        %1756 = vst [vmem:[%s283 + $0x68] sm:$0xff] %v1692
        %1757 = vst [vmem:[%s283 + $0x70] sm:$0xff] %v1693
        %1758 = vst [vmem:[%s283 + $0x78] sm:$0xff] %v1694
        %1759 = vst [vmem:[%s283 + $0x80] sm:$0xff] %v1695
        %1760 = vst [vmem:[%s283 + $0x88] sm:$0xff] %v1696
        %1761 = vst [vmem:[%s283 + $0x90] sm:$0xff] %v1697
        %1762 = vst [vmem:[%s283 + $0x98] sm:$0xff] %v1698
        %1763 = vst [vmem:[%s283 + $0xa0] sm:$0xff] %v1699
        %1764 = vst [vmem:[%s283 + $0xa8] sm:$0xff] %v1700
        %1765 = vst [vmem:[%s283 + $0xb0] sm:$0xff] %v1701
        %1766 = vst [vmem:[%s283 + $0xb8] sm:$0xff] %v1702
        %1767 = vst [vmem:[%s283 + $0xc0] sm:$0xff] %v1703
        %1768 = vst [vmem:[%s283 + $0xc8] sm:$0xff] %v1704
        %1769 = vst [vmem:[%s283 + $0xd0] sm:$0xff] %v1705
        %1770 = vst [vmem:[%s283 + $0xd8] sm:$0xff] %v1706
        %1771 = vst [vmem:[%s283 + $0xe0] sm:$0xff] %v1707
        %1772 = vst [vmem:[%s283 + $0xe8] sm:$0xff] %v1708
        %1773 = vst [vmem:[%s283 + $0xf0] sm:$0xff] %v1709
        %1774 = vst [vmem:[%s283 + $0xf8] sm:$0xff] %v1710
        %1775 = vst [vmem:[%s283 + $0x100] sm:$0xff] %v1711
        %1776 = vst [vmem:[%s283 + $0x108] sm:$0xff] %v1712
        %1777 = vst [vmem:[%s283 + $0x110] sm:$0xff] %v1713
        %1778 = vst [vmem:[%s283 + $0x118] sm:$0xff] %v1714
        %1779 = vst [vmem:[%s283 + $0x120] sm:$0xff] %v1715
        %1780 = vst [vmem:[%s283 + $0x128] sm:$0xff] %v1716
        %1781 = vst [vmem:[%s283 + $0x130] sm:$0xff] %v1717
        %1782 = vst [vmem:[%s283 + $0x138] sm:$0xff] %v1718
        %1783 = vst [vmem:[%s283 + $0x140] sm:$0xff] %v1719
        %1784 = vst [vmem:[%s283 + $0x148] sm:$0xff] %v1720
        %1785 = vst [vmem:[%s283 + $0x150] sm:$0xff] %v1721
        %1786 = vst [vmem:[%s283 + $0x158] sm:$0xff] %v1722
        %1787 = vst [vmem:[%s283 + $0x160] sm:$0xff] %v1723
        %1788 = vst [vmem:[%s283 + $0x168] sm:$0xff] %v1724
        %1789 = vst [vmem:[%s283 + $0x170] sm:$0xff] %v1725
        %1790 = vst [vmem:[%s283 + $0x178] sm:$0xff] %v1726
        %1791 = vst [vmem:[%s283 + $0x180] sm:$0xff] %v1727
        %1792 = vst [vmem:[%s283 + $0x188] sm:$0xff] %v1728
        %1793 = vst [vmem:[%s283 + $0x190] sm:$0xff] %v1729
        %1794 = vst [vmem:[%s283 + $0x198] sm:$0xff] %v1730
        %1795 = vst [vmem:[%s283 + $0x1a0] sm:$0xff] %v1731
        %1796 = vst [vmem:[%s283 + $0x1a8] sm:$0xff] %v1732
        %1797 = vst [vmem:[%s283 + $0x1b0] sm:$0xff] %v1733
        %1798 = vst [vmem:[%s283 + $0x1b8] sm:$0xff] %v1734
        %1799 = vst [vmem:[%s283 + $0x1c0] sm:$0xff] %v1735
        %1800 = vst [vmem:[%s283 + $0x1c8] sm:$0xff] %v1736
        %1801 = vst [vmem:[%s283 + $0x1d0] sm:$0xff] %v1737
        %1802 = vst [vmem:[%s283 + $0x1d8] sm:$0xff] %v1738
        %1803 = vst [vmem:[%s283 + $0x1e0] sm:$0xff] %v1739
        %1804 = vst [vmem:[%s283 + $0x1e8] sm:$0xff] %v1740
        %1805 = vst [vmem:[%s283 + $0x1f0] sm:$0xff] %v1741
        %1806 = vst [vmem:[%s283 + $0x1f8] sm:$0xff] %v1742
        %s1807 = sand.u32 %s142, 1
        %s1808 = scalar_lea.sflag [#allocation4], %s1807
        %s1809 = sand.u32 %s142, 1
        %s1810 = smul.addr %s1809, 512
        %s1811 = scalar_lea.vmem [#allocation10], %s1810
        // Predicated region
        $region57: #{tpu_custom_call.1} parent=39 // pred_check
          %p1812 = pneg %p152
        $region58: #{tpu_custom_call.1} parent=39 // pred_check_branch
          %1814 = sbr.rel (%p1812) target = $region60
        $region59: #{tpu_custom_call.1} parent=39 // pred_region
          %s1815 = smul.u32 4, %s24
          %s1817 = ssub.s32 8192, 8192
          %1818 = vsyncadd %s1808, %s1817
          %s1819 = smul.addr %s1815, 16
          %s1820 = smul.addr %s1819, 128
          %s1821 = scalar_lea.hbm %s5, %s1820
          %s1822 = sshll.u32 %s1811, 4
          %s1823 = int_to_ptr.vmem [resolvable:$true] %s1822
          %1828 = dma.vmem_to_hbm [thread:$0]  %s1823, 8192, %s1821, %s1808, 256, 256, 16
        $region60: #{tpu_custom_call.1} parent=39 // pred_fallthru
          _
      $region40: #{tpu_custom_call.1} parent=5 // pred_fallthru
        _
      %p1829 = scmp.le.s32.totalorder 2, %s19
      // Predicated region
      $region61: #{tpu_custom_call.1} parent=5 // pred_check
        %p1830 = pneg %p1829
      $region62: #{tpu_custom_call.1} parent=5 // pred_check_branch
        %1832 = sbr.rel (%p1830) target = $region64
      $region63: #{tpu_custom_call.1} parent=5 // pred_region
        %s1833 = ssub.s32 %s19, 2
        // Predicated region
        $region65: #{tpu_custom_call.1} parent=63 // pred_check
          %p1834 = pneg %p158
        $region66: #{tpu_custom_call.1} parent=63 // pred_check_branch
          %1836 = sbr.rel (%p1834) target = $region68
        $region67: #{tpu_custom_call.1} parent=63 // pred_region
          %s1837 = sand.u32 %s143, 1
          %s1838 = scalar_lea.sflag [#allocation4], %s1837
          %s1839 = sand.u32 %s143, 1
          %s1840 = smul.addr %s1839, 512
          %s1841 = scalar_lea.vmem [#allocation10], %s1840
          %1842 = dma.done %s1838, 8192
        $region68: #{tpu_custom_call.1} parent=63 // pred_fallthru
          _
      $region64: #{tpu_custom_call.1} parent=5 // pred_fallthru
        _
    $region6: #{tpu_custom_call.1} parent=1 // loop_footer
      %s23 = sadd.s32 1, %s19
    $region7: #{tpu_custom_call.1} parent=1 // loop_footer_branch
      %18 = sbr.rel target = $region3
    $region8: #{tpu_custom_call.1} parent=1 // loop_exit
      _
    %1843 = vsyncpa [#allocation3], 1
    %s1844 = scalar_lea.sflag [#allocation3], 1
    %1845 = vsyncpa %s1844, 1
    %1846 = vsyncpa [#allocation6], 1
    %1847 = vsyncpa [#allocation9], 1
    %1848 = vsyncpa [#allocation4], 1
    %s1849 = scalar_lea.sflag [#allocation4], 1
    %1850 = vsyncpa %s1849, 1

</llo_original>
